<compile_context>
chip_gen: v7x
topology: tpu7x:2x2x1
jax: 0.10.0
libtpu: 0.0.40
codegen_flags: <defaults>
</compile_context>

<pallas_src>
import functools

import jax
import jax.numpy as jnp
from jax.experimental import pallas as pl
from jax.experimental.pallas import tpu as pltpu

# Stand-in for the original script's `config` dict.
config = {"dropout": 0.1, "max length": 10, "num layers": 1}


def attn_decoder_kernel(ids_ref, table_ref, h0_ref, wih_ref, whh_ref, bcomb_ref,
                        bhhn_ref, wout_ref, bout_ref, out_ref, hT_ref,
                        gi_ref, hist_ref):
    """Embedding + GRU recurrence + batched projection + softmax, fully in VMEM.

    ids_ref  : (T*Bp, 1)   int32  time-major flattened token ids (padded batch)
    table_ref: (Vr, Hp)    bf16   row/lane-padded embedding table
    h0_ref   : (Bp, Hp)    f32
    wih_ref  : (Hp, 3*Hp)  bf16   gate pitch = Hp (128-lane aligned gates, order r|z|n)
    whh_ref  : (Hp, 3*Hp)  bf16
    bcomb_ref: (1, 3*Hp)   f32    b_ih (all gates) + b_hh (r,z gates only)
    bhhn_ref : (1, Hp)     f32    b_hh for the n gate (scaled by r inside the cell)
    wout_ref : (Hp, Vp)    bf16
    bout_ref : (1, Vp)     f32    padded vocab columns = -1e30 (softmax mask)
    out_ref  : (T*Bp, Vp)  f32
    hT_ref   : (Bp, Hp)    f32
    gi_ref   : (T*Bp, 3*Hp) f32   scratch: batched input-gate activations
    hist_ref : (T*Bp, Hp)  f32    scratch: per-step hidden states
    """
    TB, Hp = hist_ref.shape
    Bp = h0_ref.shape[0]
    T = TB // Bp
    Vr = table_ref.shape[0]

    # (0) In-kernel embedding lookup as a one-hot MXU matmul (replaces the wrapper's
    #     gather/transpose/pad/cast chain).  Dropout is eval-mode identity.
    ids = ids_ref[...]                                                 # (TB, 1) int32
    iota = jax.lax.broadcasted_iota(jnp.int32, (TB, Vr), 1)
    onehot = (ids == iota).astype(jnp.bfloat16)                        # (TB, Vr)
    emb = jnp.dot(onehot, table_ref[...],
                  preferred_element_type=jnp.float32)                  # (TB, Hp) f32

    # (1) Batched input-gate matmul for ALL timesteps (off the serial critical path),
    #     with the combined bias (b_ih + b_hh[r,z]) added once.
    gi_ref[...] = (
        jnp.dot(emb.astype(jnp.bfloat16), wih_ref[...],
                preferred_element_type=jnp.float32)
        + bcomb_ref[...]
    )

    # Hoisted out of the unrolled loop: one vld burst of w_hh (24 bf16 vregs) and one
    # sublane broadcast of the n-gate hidden bias (JAX does not CSE broadcasts).
    whh = whh_ref[...]                                                 # (Hp, 3*Hp) bf16
    bhh_n = jnp.broadcast_to(bhhn_ref[...], (Bp, Hp))

    # (2) Serial GRU recurrence: only h @ w_hh + gate nonlinearities per step.
    #     Gate slices are 128-lane-aligned (gate pitch = Hp).
    h = h0_ref[...]                                                    # (Bp, Hp) f32
    for t in range(T):                                                 # T static -> unrolled
        gh = jnp.dot(h.astype(jnp.bfloat16), whh,
                     preferred_element_type=jnp.float32)               # (Bp, 3*Hp)
        gi = gi_ref[t * Bp:(t + 1) * Bp, :]                            # (Bp, 3*Hp)
        r = jax.nn.sigmoid(gi[:, 0:Hp] + gh[:, 0:Hp])
        z = jax.nn.sigmoid(gi[:, Hp:2 * Hp] + gh[:, Hp:2 * Hp])
        n = jnp.tanh(gi[:, 2 * Hp:] + r * (gh[:, 2 * Hp:] + bhh_n))
        h = (1.0 - z) * n + z * h
        hist_ref[t * Bp:(t + 1) * Bp, :] = h
    hT_ref[...] = h

    # (3) Batched output projection + masked softmax (hoisted out of the recurrence).
    #     Padded vocab columns carry a -1e30 bias -> exp underflows to exactly 0.
    logits = (
        jnp.dot(hist_ref[...].astype(jnp.bfloat16), wout_ref[...],
                preferred_element_type=jnp.float32)
        + bout_ref[...]
    )                                                                  # (TB, Vp)
    m = jnp.max(logits, axis=-1, keepdims=True)
    e = jnp.exp(logits - m)
    denom = jnp.sum(e, axis=-1, keepdims=True)
    out_ref[...] = e * pl.reciprocal(denom, approx=True)               # lane-dense store


def _pad_gate_matrix(w, H, Hp):
    """(H, 3H) -> (Hp, 3*Hp); each gate block starts on a 128-lane boundary."""
    out = jnp.zeros((Hp, 3 * Hp), w.dtype)
    for g in range(3):
        out = out.at[:H, g * Hp:g * Hp + H].set(w[:, g * H:(g + 1) * H])
    return out


def _pad_gate_bias(b, H, Hp):
    """(1, 3H) -> (1, 3*Hp) with gate-aligned placement."""
    out = jnp.zeros((1, 3 * Hp), b.dtype)
    for g in range(3):
        out = out.at[:, g * Hp:g * Hp + H].set(b[:, g * H:(g + 1) * H])
    return out


def attn_decoder_forward(inputs, hidden, encoder_inputs, params):
    """JAX wrapper mirroring AttnDecoderRNN.forward.

    inputs         : (B, T)    int32 token ids
    hidden         : (1, B, H) float32  (num_layers = 1)
    encoder_inputs : (B, S)    int32 token ids (embedded-but-unused in the reference)
    returns (output (B, T, V), hidden (1, B, H))
    """
    del encoder_inputs  # faruq_emb is computed but never used in the reference forward.
    # TODO(synk): dropout is identity (eval-mode semantics); training-mode RNG dropout
    # is not implemented in the kernel.

    emb_table = params["embedding"]                                    # (V, H) f32
    V, H = emb_table.shape
    B, T = inputs.shape

    # Hardware-friendly padded sizes: batch -> sublane multiple, hidden/vocab -> lane multiple.
    Bp = max(8, -(-B // 8) * 8)
    Hp = max(128, -(-H // 128) * 128)
    Vp = max(128, -(-V // 128) * 128)
    Vr = Vp  # row-padded table height == one-hot K dim (lane-aligned)

    # Gate-aligned, lane-padded parameters; MXU operands in bf16, biases stay f32.
    w_ih = _pad_gate_matrix(params["w_ih"], H, Hp).astype(jnp.bfloat16)
    w_hh = _pad_gate_matrix(params["w_hh"], H, Hp).astype(jnp.bfloat16)
    b_ih_p = _pad_gate_bias(params["b_ih"], H, Hp)
    b_hh_p = _pad_gate_bias(params["b_hh"], H, Hp)
    # Fold b_ih (all gates) + b_hh (r,z gates) into one bias added to the batched gi;
    # keep the n-gate hidden bias separate (it is scaled by r inside the cell).
    b_comb = b_ih_p + b_hh_p.at[:, 2 * Hp:].set(0.0)
    b_hh_n = b_hh_p[:, 2 * Hp:]                                        # (1, Hp)

    table = (jnp.zeros((Vr, Hp), jnp.float32)
             .at[:V, :H].set(emb_table)).astype(jnp.bfloat16)          # (Vr, Hp)

    w_out = (jnp.zeros((Hp, Vp), jnp.float32)
             .at[:H, :V].set(params["w_out"])).astype(jnp.bfloat16)
    # Padded vocab columns get a very negative bias so softmax assigns them ~0.
    b_out = jnp.full((1, Vp), -1e30, jnp.float32).at[:, :V].set(params["b_out"])

    # Time-major flattened padded token ids (tiny integer ops only): (T*Bp, 1) int32.
    ids = jnp.pad(inputs, ((0, Bp - B), (0, 0)))                       # (Bp, T)
    ids = jnp.transpose(ids, (1, 0)).reshape(T * Bp, 1)                # (T*Bp, 1)

    h0 = jnp.pad(hidden[0], ((0, Bp - B), (0, Hp - H)))                # (Bp, Hp) f32

    TB = T * Bp
    # Advisory cost hint for XLA scheduling around the custom call.
    flops = int(2 * TB * (Vr * Hp + 6 * Hp * Hp + Hp * Vp))
    transcendentals = int(TB * (3 * Hp + Vp))
    bytes_accessed = int(
        sum(a.size * a.dtype.itemsize
            for a in (ids, table, h0, w_ih, w_hh, b_comb, b_hh_n, w_out, b_out))
        + TB * Vp * 4 + Bp * Hp * 4)

    # Everything (< 0.5 MiB) fits in VMEM on v5e/v6e/v7x, so no grid / pipelining.
    out_flat, hT = pl.pallas_call(
        attn_decoder_kernel,
        out_shape=(
            jax.ShapeDtypeStruct((TB, Vp), jnp.float32),
            jax.ShapeDtypeStruct((Bp, Hp), jnp.float32),
        ),
        in_specs=[pl.BlockSpec(memory_space=pltpu.MemorySpace.VMEM)] * 9,
        out_specs=(
            pl.BlockSpec(memory_space=pltpu.MemorySpace.VMEM),
            pl.BlockSpec(memory_space=pltpu.MemorySpace.VMEM),
        ),
        scratch_shapes=[
            pltpu.VMEM((TB, 3 * Hp), jnp.float32),   # batched input-gate activations
            pltpu.VMEM((TB, Hp), jnp.float32),       # per-step hidden states
        ],
        compiler_params=pltpu.CompilerParams(vmem_limit_bytes=32 * 1024 * 1024),
        cost_estimate=pl.CostEstimate(flops=flops,
                                      transcendentals=transcendentals,
                                      bytes_accessed=bytes_accessed),
    )(ids, table, h0, w_ih, w_hh, b_comb, b_hh_n, w_out, b_out)

    output = out_flat.reshape(T, Bp, Vp)[:, :B, :V]                    # (T, B, V)
    output = jnp.transpose(output, (1, 0, 2))                          # (B, T, V)
    return output, hT[:B, :H][None]                                    # (1, B, H)


def reference_forward(inputs, hidden, encoder_inputs, params):
    """Pure-JAX f32 reference (same math as the PyTorch module)."""
    del encoder_inputs
    H = params["w_ih"].shape[0]
    emb = jnp.take(params["embedding"], inputs, axis=0)                # (B, T, H)
    h = hidden[0]
    outs = []
    for t in range(emb.shape[1]):
        x_t = emb[:, t, :]
        gi = x_t @ params["w_ih"] + params["b_ih"]
        gh = h @ params["w_hh"] + params["b_hh"]
        r = jax.nn.sigmoid(gi[:, :H] + gh[:, :H])
        z = jax.nn.sigmoid(gi[:, H:2 * H] + gh[:, H:2 * H])
        n = jnp.tanh(gi[:, 2 * H:] + r * gh[:, 2 * H:])
        h = (1.0 - z) * n + z * h
        logits = h @ params["w_out"] + params["b_out"]
        outs.append(jax.nn.softmax(logits, axis=-1))
    return jnp.stack(outs, axis=1), h[None]


def init_params(key, output_size, hidden_size_arg):
    H = hidden_size_arg * 2          # module doubles the hidden size internally
    V = output_size
    ks = jax.random.split(key, 8)
    s = 0.1
    return {
        "embedding": jax.random.normal(ks[0], (V, H), jnp.float32) * s,
        "w_ih": jax.random.normal(ks[1], (H, 3 * H), jnp.float32) * s,
        "w_hh": jax.random.normal(ks[2], (H, 3 * H), jnp.float32) * s,
        "b_ih": jax.random.normal(ks[3], (1, 3 * H), jnp.float32) * s,
        "b_hh": jax.random.normal(ks[4], (1, 3 * H), jnp.float32) * s,
        "w_out": jax.random.normal(ks[5], (H, V), jnp.float32) * s,
        "b_out": jax.random.normal(ks[6], (1, V), jnp.float32) * s,
        # self.attn / self.attn_combine exist in __init__ but are dead in forward(),
        # so they are intentionally not materialized here.
    }


if __name__ == "__main__":
    key = jax.random.PRNGKey(0)
    k_par, k_in, k_enc, k_h = jax.random.split(key, 4)

    output_size = 16        # vocab V
    hidden_size_arg = 16    # module uses H = 2*16 = 32
    B, T, S = 2, 8, config["max length"]
    H = hidden_size_arg * 2

    params = init_params(k_par, output_size, hidden_size_arg)
    inputs = jax.random.randint(k_in, (B, T), 0, output_size, dtype=jnp.int32)
    encoder_inputs = jax.random.randint(k_enc, (B, S), 0, output_size, dtype=jnp.int32)
    hidden0 = jnp.zeros((config["num layers"], B, H), jnp.float32)  # initHidden-style zeros

    fwd = jax.jit(functools.partial(attn_decoder_forward, params=params))
    output, hidden = fwd(inputs, hidden0, encoder_inputs)
    jax.block_until_ready((output, hidden))

    ref_out, ref_hidden = reference_forward(inputs, hidden0, encoder_inputs, params)
    assert output.shape == (B, T, output_size)
    assert hidden.shape == (config["num layers"], B, H)
    # Tolerances account for bf16 MXU operands + approximate EUP reciprocal in softmax.
    assert jnp.allclose(output, ref_out, atol=1e-2, rtol=1e-2)
    assert jnp.allclose(hidden, ref_hidden, atol=1e-2, rtol=1e-2)
    # softmax rows sum to ~1
    assert jnp.allclose(jnp.sum(output, axis=2), jnp.ones((B, T)), atol=1e-2)

    print("KERNEL_OK")
</pallas_src>

<mosaic_0001>
module attributes {stable_mosaic.version = 11 : i64} {
  func.func @attn_decoder_kernel(%arg0: memref<64x1xi32, #tpu.memory_space<vmem>>, %arg1: memref<128x128xbf16, #tpu.memory_space<vmem>>, %arg2: memref<8x128xf32, #tpu.memory_space<vmem>>, %arg3: memref<128x384xbf16, #tpu.memory_space<vmem>>, %arg4: memref<128x384xbf16, #tpu.memory_space<vmem>>, %arg5: memref<1x384xf32, #tpu.memory_space<vmem>>, %arg6: memref<1x128xf32, #tpu.memory_space<vmem>>, %arg7: memref<128x128xbf16, #tpu.memory_space<vmem>>, %arg8: memref<1x128xf32, #tpu.memory_space<vmem>>, %arg9: memref<64x128xf32, #tpu.memory_space<vmem>>, %arg10: memref<8x128xf32, #tpu.memory_space<vmem>>, %arg11: memref<64x384xf32, #tpu.memory_space<vmem>>, %arg12: memref<64x128xf32, #tpu.memory_space<vmem>>) attributes {dimension_semantics = [], scalar_prefetch = 0 : i64, scratch_operands = 2 : i64, tpu.core_type = #tpu.core_type<tc>} {
    %c0 = arith.constant 0 : index
    %c0_0 = arith.constant 0 : index
    %0 = vector.load %arg0[%c0, %c0_0] : memref<64x1xi32, #tpu.memory_space<vmem>>, vector<64x1xi32>
    %1 = tpu.iota {dimensions = array<i32: 1>} : vector<64x128xi32>
    %2 = vector.broadcast %0 : vector<64x1xi32> to vector<64x128xi32>
    %3 = arith.cmpi eq, %2, %1 : vector<64x128xi32>
    %4 = arith.extui %3 : vector<64x128xi1> to vector<64x128xi32>
    %5 = arith.sitofp %4 : vector<64x128xi32> to vector<64x128xf32>
    %6 = arith.truncf %5 : vector<64x128xf32> to vector<64x128xbf16>
    %c0_1 = arith.constant 0 : index
    %c0_2 = arith.constant 0 : index
    %7 = vector.load %arg1[%c0_1, %c0_2] : memref<128x128xbf16, #tpu.memory_space<vmem>>, vector<128x128xbf16>
    %cst = arith.constant dense<0.000000e+00> : vector<64x128xf32>
    %8 = tpu.matmul %6, %7, %cst {dimension_numbers = #tpu.dot_dimension_numbers<[1], [0], [0], [1], [0, 0, 1, 1], [], []>} : vector<64x128xbf16>, vector<128x128xbf16>, vector<64x128xf32> -> vector<64x128xf32>
    %9 = arith.truncf %8 : vector<64x128xf32> to vector<64x128xbf16>
    %c0_3 = arith.constant 0 : index
    %c0_4 = arith.constant 0 : index
    %10 = vector.load %arg3[%c0_3, %c0_4] : memref<128x384xbf16, #tpu.memory_space<vmem>>, vector<128x384xbf16>
    %cst_5 = arith.constant dense<0.000000e+00> : vector<64x384xf32>
    %11 = tpu.matmul %9, %10, %cst_5 {dimension_numbers = #tpu.dot_dimension_numbers<[1], [0], [0], [1], [0, 0, 1, 1], [], []>} : vector<64x128xbf16>, vector<128x384xbf16>, vector<64x384xf32> -> vector<64x384xf32>
    %c0_6 = arith.constant 0 : index
    %c0_7 = arith.constant 0 : index
    %12 = vector.load %arg5[%c0_6, %c0_7] : memref<1x384xf32, #tpu.memory_space<vmem>>, vector<1x384xf32>
    %13 = vector.broadcast %12 : vector<1x384xf32> to vector<64x384xf32>
    %14 = arith.addf %11, %13 : vector<64x384xf32>
    %c0_8 = arith.constant 0 : index
    %c0_9 = arith.constant 0 : index
    %15 = vector.load %arg11[%c0_8, %c0_9] : memref<64x384xf32, #tpu.memory_space<vmem>>, vector<64x384xf32>
    tpu.vector_store %arg11[%c0_8, %c0_9], %14 {strides = array<i32>} : memref<64x384xf32, #tpu.memory_space<vmem>>, vector<64x384xf32>,
    %c0_10 = arith.constant 0 : index
    %c0_11 = arith.constant 0 : index
    %16 = vector.load %arg4[%c0_10, %c0_11] : memref<128x384xbf16, #tpu.memory_space<vmem>>, vector<128x384xbf16>
    %c0_12 = arith.constant 0 : index
    %c0_13 = arith.constant 0 : index
    %17 = vector.load %arg6[%c0_12, %c0_13] : memref<1x128xf32, #tpu.memory_space<vmem>>, vector<1x128xf32>
    %18 = vector.shape_cast %17 : vector<1x128xf32> to vector<1x128xf32>
    %19 = vector.broadcast %18 : vector<1x128xf32> to vector<8x128xf32>
    %c0_14 = arith.constant 0 : index
    %c0_15 = arith.constant 0 : index
    %20 = vector.load %arg2[%c0_14, %c0_15] : memref<8x128xf32, #tpu.memory_space<vmem>>, vector<8x128xf32>
    %21 = arith.truncf %20 : vector<8x128xf32> to vector<8x128xbf16>
    %cst_16 = arith.constant dense<0.000000e+00> : vector<8x384xf32>
    %22 = tpu.matmul %21, %16, %cst_16 {dimension_numbers = #tpu.dot_dimension_numbers<[1], [0], [0], [1], [0, 0, 1, 1], [], []>} : vector<8x128xbf16>, vector<128x384xbf16>, vector<8x384xf32> -> vector<8x384xf32>
    %c0_17 = arith.constant 0 : index
    %c0_18 = arith.constant 0 : index
    %23 = vector.load %arg11[%c0_17, %c0_18] : memref<64x384xf32, #tpu.memory_space<vmem>>, vector<8x384xf32>
    %24 = vector.extract_strided_slice %23 {offsets = [0, 0], sizes = [8, 128], strides = [1, 1]} : vector<8x384xf32> to vector<8x128xf32>
    %25 = vector.extract_strided_slice %22 {offsets = [0, 0], sizes = [8, 128], strides = [1, 1]} : vector<8x384xf32> to vector<8x128xf32>
    %26 = arith.addf %24, %25 : vector<8x128xf32>
    %27 = arith.negf %26 : vector<8x128xf32>
    %28 = math.exp %27 : vector<8x128xf32>
    %cst_19 = arith.constant 1.000000e+00 : f32
    %29 = vector.broadcast %cst_19 : f32 to vector<8x128xf32>
    %30 = arith.addf %29, %28 : vector<8x128xf32>
    %31 = arith.divf %29, %30 : vector<8x128xf32>
    %32 = vector.extract_strided_slice %23 {offsets = [0, 128], sizes = [8, 128], strides = [1, 1]} : vector<8x384xf32> to vector<8x128xf32>
    %33 = vector.extract_strided_slice %22 {offsets = [0, 128], sizes = [8, 128], strides = [1, 1]} : vector<8x384xf32> to vector<8x128xf32>
    %34 = arith.addf %32, %33 : vector<8x128xf32>
    %35 = arith.negf %34 : vector<8x128xf32>
    %36 = math.exp %35 : vector<8x128xf32>
    %cst_20 = arith.constant 1.000000e+00 : f32
    %37 = vector.broadcast %cst_20 : f32 to vector<8x128xf32>
    %38 = arith.addf %37, %36 : vector<8x128xf32>
    %39 = arith.divf %37, %38 : vector<8x128xf32>
    %40 = vector.extract_strided_slice %23 {offsets = [0, 256], sizes = [8, 128], strides = [1, 1]} : vector<8x384xf32> to vector<8x128xf32>
    %41 = vector.extract_strided_slice %22 {offsets = [0, 256], sizes = [8, 128], strides = [1, 1]} : vector<8x384xf32> to vector<8x128xf32>
    %42 = arith.addf %41, %19 : vector<8x128xf32>
    %43 = arith.mulf %31, %42 : vector<8x128xf32>
    %44 = arith.addf %40, %43 : vector<8x128xf32>
    %45 = math.tanh %44 : vector<8x128xf32>
    %cst_21 = arith.constant 1.000000e+00 : f32
    %46 = vector.broadcast %cst_21 : f32 to vector<8x128xf32>
    %47 = arith.subf %46, %39 : vector<8x128xf32>
    %48 = arith.mulf %47, %45 : vector<8x128xf32>
    %49 = arith.mulf %39, %20 : vector<8x128xf32>
    %50 = arith.addf %48, %49 : vector<8x128xf32>
    %c0_22 = arith.constant 0 : index
    %c0_23 = arith.constant 0 : index
    %51 = vector.load %arg12[%c0_22, %c0_23] : memref<64x128xf32, #tpu.memory_space<vmem>>, vector<8x128xf32>
    tpu.vector_store %arg12[%c0_22, %c0_23], %50 {strides = array<i32>} : memref<64x128xf32, #tpu.memory_space<vmem>>, vector<8x128xf32>,
    %52 = arith.truncf %50 : vector<8x128xf32> to vector<8x128xbf16>
    %cst_24 = arith.constant dense<0.000000e+00> : vector<8x384xf32>
    %53 = tpu.matmul %52, %16, %cst_24 {dimension_numbers = #tpu.dot_dimension_numbers<[1], [0], [0], [1], [0, 0, 1, 1], [], []>} : vector<8x128xbf16>, vector<128x384xbf16>, vector<8x384xf32> -> vector<8x384xf32>
    %c8 = arith.constant 8 : index
    %c0_25 = arith.constant 0 : index
    %54 = vector.load %arg11[%c8, %c0_25] : memref<64x384xf32, #tpu.memory_space<vmem>>, vector<8x384xf32>
    %55 = vector.extract_strided_slice %54 {offsets = [0, 0], sizes = [8, 128], strides = [1, 1]} : vector<8x384xf32> to vector<8x128xf32>
    %56 = vector.extract_strided_slice %53 {offsets = [0, 0], sizes = [8, 128], strides = [1, 1]} : vector<8x384xf32> to vector<8x128xf32>
    %57 = arith.addf %55, %56 : vector<8x128xf32>
    %58 = arith.negf %57 : vector<8x128xf32>
    %59 = math.exp %58 : vector<8x128xf32>
    %cst_26 = arith.constant 1.000000e+00 : f32
    %60 = vector.broadcast %cst_26 : f32 to vector<8x128xf32>
    %61 = arith.addf %60, %59 : vector<8x128xf32>
    %62 = arith.divf %60, %61 : vector<8x128xf32>
    %63 = vector.extract_strided_slice %54 {offsets = [0, 128], sizes = [8, 128], strides = [1, 1]} : vector<8x384xf32> to vector<8x128xf32>
    %64 = vector.extract_strided_slice %53 {offsets = [0, 128], sizes = [8, 128], strides = [1, 1]} : vector<8x384xf32> to vector<8x128xf32>
    %65 = arith.addf %63, %64 : vector<8x128xf32>
    %66 = arith.negf %65 : vector<8x128xf32>
    %67 = math.exp %66 : vector<8x128xf32>
    %cst_27 = arith.constant 1.000000e+00 : f32
    %68 = vector.broadcast %cst_27 : f32 to vector<8x128xf32>
    %69 = arith.addf %68, %67 : vector<8x128xf32>
    %70 = arith.divf %68, %69 : vector<8x128xf32>
    %71 = vector.extract_strided_slice %54 {offsets = [0, 256], sizes = [8, 128], strides = [1, 1]} : vector<8x384xf32> to vector<8x128xf32>
    %72 = vector.extract_strided_slice %53 {offsets = [0, 256], sizes = [8, 128], strides = [1, 1]} : vector<8x384xf32> to vector<8x128xf32>
    %73 = arith.addf %72, %19 : vector<8x128xf32>
    %74 = arith.mulf %62, %73 : vector<8x128xf32>
    %75 = arith.addf %71, %74 : vector<8x128xf32>
    %76 = math.tanh %75 : vector<8x128xf32>
    %cst_28 = arith.constant 1.000000e+00 : f32
    %77 = vector.broadcast %cst_28 : f32 to vector<8x128xf32>
    %78 = arith.subf %77, %70 : vector<8x128xf32>
    %79 = arith.mulf %78, %76 : vector<8x128xf32>
    %80 = arith.mulf %70, %50 : vector<8x128xf32>
    %81 = arith.addf %79, %80 : vector<8x128xf32>
    %c8_29 = arith.constant 8 : index
    %c0_30 = arith.constant 0 : index
    %82 = vector.load %arg12[%c8_29, %c0_30] : memref<64x128xf32, #tpu.memory_space<vmem>>, vector<8x128xf32>
    tpu.vector_store %arg12[%c8_29, %c0_30], %81 {strides = array<i32>} : memref<64x128xf32, #tpu.memory_space<vmem>>, vector<8x128xf32>,
    %83 = arith.truncf %81 : vector<8x128xf32> to vector<8x128xbf16>
    %cst_31 = arith.constant dense<0.000000e+00> : vector<8x384xf32>
    %84 = tpu.matmul %83, %16, %cst_31 {dimension_numbers = #tpu.dot_dimension_numbers<[1], [0], [0], [1], [0, 0, 1, 1], [], []>} : vector<8x128xbf16>, vector<128x384xbf16>, vector<8x384xf32> -> vector<8x384xf32>
    %c16 = arith.constant 16 : index
    %c0_32 = arith.constant 0 : index
    %85 = vector.load %arg11[%c16, %c0_32] : memref<64x384xf32, #tpu.memory_space<vmem>>, vector<8x384xf32>
    %86 = vector.extract_strided_slice %85 {offsets = [0, 0], sizes = [8, 128], strides = [1, 1]} : vector<8x384xf32> to vector<8x128xf32>
    %87 = vector.extract_strided_slice %84 {offsets = [0, 0], sizes = [8, 128], strides = [1, 1]} : vector<8x384xf32> to vector<8x128xf32>
    %88 = arith.addf %86, %87 : vector<8x128xf32>
    %89 = arith.negf %88 : vector<8x128xf32>
    %90 = math.exp %89 : vector<8x128xf32>
    %cst_33 = arith.constant 1.000000e+00 : f32
    %91 = vector.broadcast %cst_33 : f32 to vector<8x128xf32>
    %92 = arith.addf %91, %90 : vector<8x128xf32>
    %93 = arith.divf %91, %92 : vector<8x128xf32>
    %94 = vector.extract_strided_slice %85 {offsets = [0, 128], sizes = [8, 128], strides = [1, 1]} : vector<8x384xf32> to vector<8x128xf32>
    %95 = vector.extract_strided_slice %84 {offsets = [0, 128], sizes = [8, 128], strides = [1, 1]} : vector<8x384xf32> to vector<8x128xf32>
    %96 = arith.addf %94, %95 : vector<8x128xf32>
    %97 = arith.negf %96 : vector<8x128xf32>
    %98 = math.exp %97 : vector<8x128xf32>
    %cst_34 = arith.constant 1.000000e+00 : f32
    %99 = vector.broadcast %cst_34 : f32 to vector<8x128xf32>
    %100 = arith.addf %99, %98 : vector<8x128xf32>
    %101 = arith.divf %99, %100 : vector<8x128xf32>
    %102 = vector.extract_strided_slice %85 {offsets = [0, 256], sizes = [8, 128], strides = [1, 1]} : vector<8x384xf32> to vector<8x128xf32>
    %103 = vector.extract_strided_slice %84 {offsets = [0, 256], sizes = [8, 128], strides = [1, 1]} : vector<8x384xf32> to vector<8x128xf32>
    %104 = arith.addf %103, %19 : vector<8x128xf32>
    %105 = arith.mulf %93, %104 : vector<8x128xf32>
    %106 = arith.addf %102, %105 : vector<8x128xf32>
    %107 = math.tanh %106 : vector<8x128xf32>
    %cst_35 = arith.constant 1.000000e+00 : f32
    %108 = vector.broadcast %cst_35 : f32 to vector<8x128xf32>
    %109 = arith.subf %108, %101 : vector<8x128xf32>
    %110 = arith.mulf %109, %107 : vector<8x128xf32>
    %111 = arith.mulf %101, %81 : vector<8x128xf32>
    %112 = arith.addf %110, %111 : vector<8x128xf32>
    %c16_36 = arith.constant 16 : index
    %c0_37 = arith.constant 0 : index
    %113 = vector.load %arg12[%c16_36, %c0_37] : memref<64x128xf32, #tpu.memory_space<vmem>>, vector<8x128xf32>
    tpu.vector_store %arg12[%c16_36, %c0_37], %112 {strides = array<i32>} : memref<64x128xf32, #tpu.memory_space<vmem>>, vector<8x128xf32>,
    %114 = arith.truncf %112 : vector<8x128xf32> to vector<8x128xbf16>
    %cst_38 = arith.constant dense<0.000000e+00> : vector<8x384xf32>
    %115 = tpu.matmul %114, %16, %cst_38 {dimension_numbers = #tpu.dot_dimension_numbers<[1], [0], [0], [1], [0, 0, 1, 1], [], []>} : vector<8x128xbf16>, vector<128x384xbf16>, vector<8x384xf32> -> vector<8x384xf32>
    %c24 = arith.constant 24 : index
    %c0_39 = arith.constant 0 : index
    %116 = vector.load %arg11[%c24, %c0_39] : memref<64x384xf32, #tpu.memory_space<vmem>>, vector<8x384xf32>
    %117 = vector.extract_strided_slice %116 {offsets = [0, 0], sizes = [8, 128], strides = [1, 1]} : vector<8x384xf32> to vector<8x128xf32>
    %118 = vector.extract_strided_slice %115 {offsets = [0, 0], sizes = [8, 128], strides = [1, 1]} : vector<8x384xf32> to vector<8x128xf32>
    %119 = arith.addf %117, %118 : vector<8x128xf32>
    %120 = arith.negf %119 : vector<8x128xf32>
    %121 = math.exp %120 : vector<8x128xf32>
    %cst_40 = arith.constant 1.000000e+00 : f32
    %122 = vector.broadcast %cst_40 : f32 to vector<8x128xf32>
    %123 = arith.addf %122, %121 : vector<8x128xf32>
    %124 = arith.divf %122, %123 : vector<8x128xf32>
    %125 = vector.extract_strided_slice %116 {offsets = [0, 128], sizes = [8, 128], strides = [1, 1]} : vector<8x384xf32> to vector<8x128xf32>
    %126 = vector.extract_strided_slice %115 {offsets = [0, 128], sizes = [8, 128], strides = [1, 1]} : vector<8x384xf32> to vector<8x128xf32>
    %127 = arith.addf %125, %126 : vector<8x128xf32>
    %128 = arith.negf %127 : vector<8x128xf32>
    %129 = math.exp %128 : vector<8x128xf32>
    %cst_41 = arith.constant 1.000000e+00 : f32
    %130 = vector.broadcast %cst_41 : f32 to vector<8x128xf32>
    %131 = arith.addf %130, %129 : vector<8x128xf32>
    %132 = arith.divf %130, %131 : vector<8x128xf32>
    %133 = vector.extract_strided_slice %116 {offsets = [0, 256], sizes = [8, 128], strides = [1, 1]} : vector<8x384xf32> to vector<8x128xf32>
    %134 = vector.extract_strided_slice %115 {offsets = [0, 256], sizes = [8, 128], strides = [1, 1]} : vector<8x384xf32> to vector<8x128xf32>
    %135 = arith.addf %134, %19 : vector<8x128xf32>
    %136 = arith.mulf %124, %135 : vector<8x128xf32>
    %137 = arith.addf %133, %136 : vector<8x128xf32>
    %138 = math.tanh %137 : vector<8x128xf32>
    %cst_42 = arith.constant 1.000000e+00 : f32
    %139 = vector.broadcast %cst_42 : f32 to vector<8x128xf32>
    %140 = arith.subf %139, %132 : vector<8x128xf32>
    %141 = arith.mulf %140, %138 : vector<8x128xf32>
    %142 = arith.mulf %132, %112 : vector<8x128xf32>
    %143 = arith.addf %141, %142 : vector<8x128xf32>
    %c24_43 = arith.constant 24 : index
    %c0_44 = arith.constant 0 : index
    %144 = vector.load %arg12[%c24_43, %c0_44] : memref<64x128xf32, #tpu.memory_space<vmem>>, vector<8x128xf32>
    tpu.vector_store %arg12[%c24_43, %c0_44], %143 {strides = array<i32>} : memref<64x128xf32, #tpu.memory_space<vmem>>, vector<8x128xf32>,
    %145 = arith.truncf %143 : vector<8x128xf32> to vector<8x128xbf16>
    %cst_45 = arith.constant dense<0.000000e+00> : vector<8x384xf32>
    %146 = tpu.matmul %145, %16, %cst_45 {dimension_numbers = #tpu.dot_dimension_numbers<[1], [0], [0], [1], [0, 0, 1, 1], [], []>} : vector<8x128xbf16>, vector<128x384xbf16>, vector<8x384xf32> -> vector<8x384xf32>
    %c32 = arith.constant 32 : index
    %c0_46 = arith.constant 0 : index
    %147 = vector.load %arg11[%c32, %c0_46] : memref<64x384xf32, #tpu.memory_space<vmem>>, vector<8x384xf32>
    %148 = vector.extract_strided_slice %147 {offsets = [0, 0], sizes = [8, 128], strides = [1, 1]} : vector<8x384xf32> to vector<8x128xf32>
    %149 = vector.extract_strided_slice %146 {offsets = [0, 0], sizes = [8, 128], strides = [1, 1]} : vector<8x384xf32> to vector<8x128xf32>
    %150 = arith.addf %148, %149 : vector<8x128xf32>
    %151 = arith.negf %150 : vector<8x128xf32>
    %152 = math.exp %151 : vector<8x128xf32>
    %cst_47 = arith.constant 1.000000e+00 : f32
    %153 = vector.broadcast %cst_47 : f32 to vector<8x128xf32>
    %154 = arith.addf %153, %152 : vector<8x128xf32>
    %155 = arith.divf %153, %154 : vector<8x128xf32>
    %156 = vector.extract_strided_slice %147 {offsets = [0, 128], sizes = [8, 128], strides = [1, 1]} : vector<8x384xf32> to vector<8x128xf32>
    %157 = vector.extract_strided_slice %146 {offsets = [0, 128], sizes = [8, 128], strides = [1, 1]} : vector<8x384xf32> to vector<8x128xf32>
    %158 = arith.addf %156, %157 : vector<8x128xf32>
    %159 = arith.negf %158 : vector<8x128xf32>
    %160 = math.exp %159 : vector<8x128xf32>
    %cst_48 = arith.constant 1.000000e+00 : f32
    %161 = vector.broadcast %cst_48 : f32 to vector<8x128xf32>
    %162 = arith.addf %161, %160 : vector<8x128xf32>
    %163 = arith.divf %161, %162 : vector<8x128xf32>
    %164 = vector.extract_strided_slice %147 {offsets = [0, 256], sizes = [8, 128], strides = [1, 1]} : vector<8x384xf32> to vector<8x128xf32>
    %165 = vector.extract_strided_slice %146 {offsets = [0, 256], sizes = [8, 128], strides = [1, 1]} : vector<8x384xf32> to vector<8x128xf32>
    %166 = arith.addf %165, %19 : vector<8x128xf32>
    %167 = arith.mulf %155, %166 : vector<8x128xf32>
    %168 = arith.addf %164, %167 : vector<8x128xf32>
    %169 = math.tanh %168 : vector<8x128xf32>
    %cst_49 = arith.constant 1.000000e+00 : f32
    %170 = vector.broadcast %cst_49 : f32 to vector<8x128xf32>
    %171 = arith.subf %170, %163 : vector<8x128xf32>
    %172 = arith.mulf %171, %169 : vector<8x128xf32>
    %173 = arith.mulf %163, %143 : vector<8x128xf32>
    %174 = arith.addf %172, %173 : vector<8x128xf32>
    %c32_50 = arith.constant 32 : index
    %c0_51 = arith.constant 0 : index
    %175 = vector.load %arg12[%c32_50, %c0_51] : memref<64x128xf32, #tpu.memory_space<vmem>>, vector<8x128xf32>
    tpu.vector_store %arg12[%c32_50, %c0_51], %174 {strides = array<i32>} : memref<64x128xf32, #tpu.memory_space<vmem>>, vector<8x128xf32>,
    %176 = arith.truncf %174 : vector<8x128xf32> to vector<8x128xbf16>
    %cst_52 = arith.constant dense<0.000000e+00> : vector<8x384xf32>
    %177 = tpu.matmul %176, %16, %cst_52 {dimension_numbers = #tpu.dot_dimension_numbers<[1], [0], [0], [1], [0, 0, 1, 1], [], []>} : vector<8x128xbf16>, vector<128x384xbf16>, vector<8x384xf32> -> vector<8x384xf32>
    %c40 = arith.constant 40 : index
    %c0_53 = arith.constant 0 : index
    %178 = vector.load %arg11[%c40, %c0_53] : memref<64x384xf32, #tpu.memory_space<vmem>>, vector<8x384xf32>
    %179 = vector.extract_strided_slice %178 {offsets = [0, 0], sizes = [8, 128], strides = [1, 1]} : vector<8x384xf32> to vector<8x128xf32>
    %180 = vector.extract_strided_slice %177 {offsets = [0, 0], sizes = [8, 128], strides = [1, 1]} : vector<8x384xf32> to vector<8x128xf32>
    %181 = arith.addf %179, %180 : vector<8x128xf32>
    %182 = arith.negf %181 : vector<8x128xf32>
    %183 = math.exp %182 : vector<8x128xf32>
    %cst_54 = arith.constant 1.000000e+00 : f32
    %184 = vector.broadcast %cst_54 : f32 to vector<8x128xf32>
    %185 = arith.addf %184, %183 : vector<8x128xf32>
    %186 = arith.divf %184, %185 : vector<8x128xf32>
    %187 = vector.extract_strided_slice %178 {offsets = [0, 128], sizes = [8, 128], strides = [1, 1]} : vector<8x384xf32> to vector<8x128xf32>
    %188 = vector.extract_strided_slice %177 {offsets = [0, 128], sizes = [8, 128], strides = [1, 1]} : vector<8x384xf32> to vector<8x128xf32>
    %189 = arith.addf %187, %188 : vector<8x128xf32>
    %190 = arith.negf %189 : vector<8x128xf32>
    %191 = math.exp %190 : vector<8x128xf32>
    %cst_55 = arith.constant 1.000000e+00 : f32
    %192 = vector.broadcast %cst_55 : f32 to vector<8x128xf32>
    %193 = arith.addf %192, %191 : vector<8x128xf32>
    %194 = arith.divf %192, %193 : vector<8x128xf32>
    %195 = vector.extract_strided_slice %178 {offsets = [0, 256], sizes = [8, 128], strides = [1, 1]} : vector<8x384xf32> to vector<8x128xf32>
    %196 = vector.extract_strided_slice %177 {offsets = [0, 256], sizes = [8, 128], strides = [1, 1]} : vector<8x384xf32> to vector<8x128xf32>
    %197 = arith.addf %196, %19 : vector<8x128xf32>
    %198 = arith.mulf %186, %197 : vector<8x128xf32>
    %199 = arith.addf %195, %198 : vector<8x128xf32>
    %200 = math.tanh %199 : vector<8x128xf32>
    %cst_56 = arith.constant 1.000000e+00 : f32
    %201 = vector.broadcast %cst_56 : f32 to vector<8x128xf32>
    %202 = arith.subf %201, %194 : vector<8x128xf32>
    %203 = arith.mulf %202, %200 : vector<8x128xf32>
    %204 = arith.mulf %194, %174 : vector<8x128xf32>
    %205 = arith.addf %203, %204 : vector<8x128xf32>
    %c40_57 = arith.constant 40 : index
    %c0_58 = arith.constant 0 : index
    %206 = vector.load %arg12[%c40_57, %c0_58] : memref<64x128xf32, #tpu.memory_space<vmem>>, vector<8x128xf32>
    tpu.vector_store %arg12[%c40_57, %c0_58], %205 {strides = array<i32>} : memref<64x128xf32, #tpu.memory_space<vmem>>, vector<8x128xf32>,
    %207 = arith.truncf %205 : vector<8x128xf32> to vector<8x128xbf16>
    %cst_59 = arith.constant dense<0.000000e+00> : vector<8x384xf32>
    %208 = tpu.matmul %207, %16, %cst_59 {dimension_numbers = #tpu.dot_dimension_numbers<[1], [0], [0], [1], [0, 0, 1, 1], [], []>} : vector<8x128xbf16>, vector<128x384xbf16>, vector<8x384xf32> -> vector<8x384xf32>
    %c48 = arith.constant 48 : index
    %c0_60 = arith.constant 0 : index
    %209 = vector.load %arg11[%c48, %c0_60] : memref<64x384xf32, #tpu.memory_space<vmem>>, vector<8x384xf32>
    %210 = vector.extract_strided_slice %209 {offsets = [0, 0], sizes = [8, 128], strides = [1, 1]} : vector<8x384xf32> to vector<8x128xf32>
    %211 = vector.extract_strided_slice %208 {offsets = [0, 0], sizes = [8, 128], strides = [1, 1]} : vector<8x384xf32> to vector<8x128xf32>
    %212 = arith.addf %210, %211 : vector<8x128xf32>
    %213 = arith.negf %212 : vector<8x128xf32>
    %214 = math.exp %213 : vector<8x128xf32>
    %cst_61 = arith.constant 1.000000e+00 : f32
    %215 = vector.broadcast %cst_61 : f32 to vector<8x128xf32>
    %216 = arith.addf %215, %214 : vector<8x128xf32>
    %217 = arith.divf %215, %216 : vector<8x128xf32>
    %218 = vector.extract_strided_slice %209 {offsets = [0, 128], sizes = [8, 128], strides = [1, 1]} : vector<8x384xf32> to vector<8x128xf32>
    %219 = vector.extract_strided_slice %208 {offsets = [0, 128], sizes = [8, 128], strides = [1, 1]} : vector<8x384xf32> to vector<8x128xf32>
    %220 = arith.addf %218, %219 : vector<8x128xf32>
    %221 = arith.negf %220 : vector<8x128xf32>
    %222 = math.exp %221 : vector<8x128xf32>
    %cst_62 = arith.constant 1.000000e+00 : f32
    %223 = vector.broadcast %cst_62 : f32 to vector<8x128xf32>
    %224 = arith.addf %223, %222 : vector<8x128xf32>
    %225 = arith.divf %223, %224 : vector<8x128xf32>
    %226 = vector.extract_strided_slice %209 {offsets = [0, 256], sizes = [8, 128], strides = [1, 1]} : vector<8x384xf32> to vector<8x128xf32>
    %227 = vector.extract_strided_slice %208 {offsets = [0, 256], sizes = [8, 128], strides = [1, 1]} : vector<8x384xf32> to vector<8x128xf32>
    %228 = arith.addf %227, %19 : vector<8x128xf32>
    %229 = arith.mulf %217, %228 : vector<8x128xf32>
    %230 = arith.addf %226, %229 : vector<8x128xf32>
    %231 = math.tanh %230 : vector<8x128xf32>
    %cst_63 = arith.constant 1.000000e+00 : f32
    %232 = vector.broadcast %cst_63 : f32 to vector<8x128xf32>
    %233 = arith.subf %232, %225 : vector<8x128xf32>
    %234 = arith.mulf %233, %231 : vector<8x128xf32>
    %235 = arith.mulf %225, %205 : vector<8x128xf32>
    %236 = arith.addf %234, %235 : vector<8x128xf32>
    %c48_64 = arith.constant 48 : index
    %c0_65 = arith.constant 0 : index
    %237 = vector.load %arg12[%c48_64, %c0_65] : memref<64x128xf32, #tpu.memory_space<vmem>>, vector<8x128xf32>
    tpu.vector_store %arg12[%c48_64, %c0_65], %236 {strides = array<i32>} : memref<64x128xf32, #tpu.memory_space<vmem>>, vector<8x128xf32>,
    %238 = arith.truncf %236 : vector<8x128xf32> to vector<8x128xbf16>
    %cst_66 = arith.constant dense<0.000000e+00> : vector<8x384xf32>
    %239 = tpu.matmul %238, %16, %cst_66 {dimension_numbers = #tpu.dot_dimension_numbers<[1], [0], [0], [1], [0, 0, 1, 1], [], []>} : vector<8x128xbf16>, vector<128x384xbf16>, vector<8x384xf32> -> vector<8x384xf32>
    %c56 = arith.constant 56 : index
    %c0_67 = arith.constant 0 : index
    %240 = vector.load %arg11[%c56, %c0_67] : memref<64x384xf32, #tpu.memory_space<vmem>>, vector<8x384xf32>
    %241 = vector.extract_strided_slice %240 {offsets = [0, 0], sizes = [8, 128], strides = [1, 1]} : vector<8x384xf32> to vector<8x128xf32>
    %242 = vector.extract_strided_slice %239 {offsets = [0, 0], sizes = [8, 128], strides = [1, 1]} : vector<8x384xf32> to vector<8x128xf32>
    %243 = arith.addf %241, %242 : vector<8x128xf32>
    %244 = arith.negf %243 : vector<8x128xf32>
    %245 = math.exp %244 : vector<8x128xf32>
    %cst_68 = arith.constant 1.000000e+00 : f32
    %246 = vector.broadcast %cst_68 : f32 to vector<8x128xf32>
    %247 = arith.addf %246, %245 : vector<8x128xf32>
    %248 = arith.divf %246, %247 : vector<8x128xf32>
    %249 = vector.extract_strided_slice %240 {offsets = [0, 128], sizes = [8, 128], strides = [1, 1]} : vector<8x384xf32> to vector<8x128xf32>
    %250 = vector.extract_strided_slice %239 {offsets = [0, 128], sizes = [8, 128], strides = [1, 1]} : vector<8x384xf32> to vector<8x128xf32>
    %251 = arith.addf %249, %250 : vector<8x128xf32>
    %252 = arith.negf %251 : vector<8x128xf32>
    %253 = math.exp %252 : vector<8x128xf32>
    %cst_69 = arith.constant 1.000000e+00 : f32
    %254 = vector.broadcast %cst_69 : f32 to vector<8x128xf32>
    %255 = arith.addf %254, %253 : vector<8x128xf32>
    %256 = arith.divf %254, %255 : vector<8x128xf32>
    %257 = vector.extract_strided_slice %240 {offsets = [0, 256], sizes = [8, 128], strides = [1, 1]} : vector<8x384xf32> to vector<8x128xf32>
    %258 = vector.extract_strided_slice %239 {offsets = [0, 256], sizes = [8, 128], strides = [1, 1]} : vector<8x384xf32> to vector<8x128xf32>
    %259 = arith.addf %258, %19 : vector<8x128xf32>
    %260 = arith.mulf %248, %259 : vector<8x128xf32>
    %261 = arith.addf %257, %260 : vector<8x128xf32>
    %262 = math.tanh %261 : vector<8x128xf32>
    %cst_70 = arith.constant 1.000000e+00 : f32
    %263 = vector.broadcast %cst_70 : f32 to vector<8x128xf32>
    %264 = arith.subf %263, %256 : vector<8x128xf32>
    %265 = arith.mulf %264, %262 : vector<8x128xf32>
    %266 = arith.mulf %256, %236 : vector<8x128xf32>
    %267 = arith.addf %265, %266 : vector<8x128xf32>
    %c56_71 = arith.constant 56 : index
    %c0_72 = arith.constant 0 : index
    %268 = vector.load %arg12[%c56_71, %c0_72] : memref<64x128xf32, #tpu.memory_space<vmem>>, vector<8x128xf32>
    tpu.vector_store %arg12[%c56_71, %c0_72], %267 {strides = array<i32>} : memref<64x128xf32, #tpu.memory_space<vmem>>, vector<8x128xf32>,
    %c0_73 = arith.constant 0 : index
    %c0_74 = arith.constant 0 : index
    %269 = vector.load %arg10[%c0_73, %c0_74] : memref<8x128xf32, #tpu.memory_space<vmem>>, vector<8x128xf32>
    tpu.vector_store %arg10[%c0_73, %c0_74], %267 {strides = array<i32>} : memref<8x128xf32, #tpu.memory_space<vmem>>, vector<8x128xf32>,
    %c0_75 = arith.constant 0 : index
    %c0_76 = arith.constant 0 : index
    %270 = vector.load %arg12[%c0_75, %c0_76] : memref<64x128xf32, #tpu.memory_space<vmem>>, vector<64x128xf32>
    %271 = arith.truncf %270 : vector<64x128xf32> to vector<64x128xbf16>
    %c0_77 = arith.constant 0 : index
    %c0_78 = arith.constant 0 : index
    %272 = vector.load %arg7[%c0_77, %c0_78] : memref<128x128xbf16, #tpu.memory_space<vmem>>, vector<128x128xbf16>
    %cst_79 = arith.constant dense<0.000000e+00> : vector<64x128xf32>
    %273 = tpu.matmul %271, %272, %cst_79 {dimension_numbers = #tpu.dot_dimension_numbers<[1], [0], [0], [1], [0, 0, 1, 1], [], []>} : vector<64x128xbf16>, vector<128x128xbf16>, vector<64x128xf32> -> vector<64x128xf32>
    %c0_80 = arith.constant 0 : index
    %c0_81 = arith.constant 0 : index
    %274 = vector.load %arg8[%c0_80, %c0_81] : memref<1x128xf32, #tpu.memory_space<vmem>>, vector<1x128xf32>
    %275 = vector.broadcast %274 : vector<1x128xf32> to vector<64x128xf32>
    %276 = arith.addf %273, %275 : vector<64x128xf32>
    %cst_82 = arith.constant dense<0xFF800000> : vector<64xf32>
    %277 = vector.multi_reduction <maximumf>, %276, %cst_82 [1] : vector<64x128xf32> to vector<64xf32>
    %278 = vector.shape_cast %277 : vector<64xf32> to vector<64x1xf32>
    %279 = vector.broadcast %278 : vector<64x1xf32> to vector<64x128xf32>
    %280 = arith.subf %276, %279 : vector<64x128xf32>
    %281 = math.exp %280 : vector<64x128xf32>
    %cst_83 = arith.constant dense<0.000000e+00> : vector<64xf32>
    %282 = vector.multi_reduction <add>, %281, %cst_83 [1] : vector<64x128xf32> to vector<64xf32>
    %283 = vector.shape_cast %282 : vector<64xf32> to vector<64x1xf32>
    %284 = tpu.reciprocal %283 {approx = true} : vector<64x1xf32> -> vector<64x1xf32>
    %285 = vector.broadcast %284 : vector<64x1xf32> to vector<64x128xf32>
    %286 = arith.mulf %281, %285 : vector<64x128xf32>
    %c0_84 = arith.constant 0 : index
    %c0_85 = arith.constant 0 : index
    %287 = vector.load %arg9[%c0_84, %c0_85] : memref<64x128xf32, #tpu.memory_space<vmem>>, vector<64x128xf32>
    tpu.vector_store %arg9[%c0_84, %c0_85], %286 {strides = array<i32>} : memref<64x128xf32, #tpu.memory_space<vmem>>, vector<64x128xf32>,
    return
  }
}

</mosaic_0001>

<llo_original>
// kernel: attn_decoder_forward.1
$region0: #{attn_decoder_forward.1}
  #allocation0 [shape = 'u32[]', space=smem, size = 0x4, offset = 0x4, fixed_abs, tag = 'smem constant byte address 0x4 - core index']
  #allocation1 [shape = 'u32[144,128]{1,0:T(1,128)}', space=vmem, size = 0x12000, scoped, tag = 'internal scratch']
  #allocation2 [shape = 'f32[64,384]{1,0:T(8,128)}', space=vmem, size = 0x18000, scoped, tag = 'scratch operand']
  #allocation3 [shape = 'f32[64,128]{1,0:T(8,128)}', space=vmem, size = 0x8000, scoped, tag = 'scratch operand']
  %s0 = inlined_call_operand.vmem [shape: s32[64,1], index: 0, kind: input, shape index: {}]
  %s1 = inlined_call_operand.vmem [shape: bf16[128,128], index: 1, kind: input, shape index: {}]
  %s2 = inlined_call_operand.vmem [shape: f32[8,128], index: 2, kind: input, shape index: {}]
  %s3 = inlined_call_operand.vmem [shape: bf16[128,384], index: 3, kind: input, shape index: {}]
  %s4 = inlined_call_operand.vmem [shape: bf16[128,384], index: 4, kind: input, shape index: {}]
  %s5 = inlined_call_operand.vmem [shape: f32[1,384], index: 5, kind: input, shape index: {}]
  %s6 = inlined_call_operand.vmem [shape: f32[1,128], index: 6, kind: input, shape index: {}]
  %s7 = inlined_call_operand.vmem [shape: bf16[128,128], index: 7, kind: input, shape index: {}]
  %s8 = inlined_call_operand.vmem [shape: f32[1,128], index: 8, kind: input, shape index: {}]
  %s9 = inlined_call_operand.vmem [shape: f32[64,128], index: 9, kind: output, shape index: {0}]
  %s10 = inlined_call_operand.vmem [shape: f32[8,128], index: 10, kind: output, shape index: {1}]
  %11 = xla_tuple %s9, %s10
  %s12 = sld [smem:[#allocation0]]
  $region54: #{attn_decoder_forward.1} parent=0
    _
  %s14 = ssub.s32 1, %s12
  %s15 = scalar_select 0, %s14, %s12
  // Predicated region
  $region2: #{attn_decoder_forward.1} parent=0 // pred_check
    _
  $region3: #{attn_decoder_forward.1} parent=0 // pred_check_branch
    %17 = sbr.rel (0) target = $region5
  $region4: #{attn_decoder_forward.1} parent=0 // pred_region
    _
  $region5: #{attn_decoder_forward.1} parent=0 // pred_fallthru
    _
  // Predicated region
  $region6: #{attn_decoder_forward.1} parent=0 // pred_check
    _
  $region7: #{attn_decoder_forward.1} parent=0 // pred_check_branch
    %19 = sbr.rel (0) target = $region9
  $region8: #{attn_decoder_forward.1} parent=0 // pred_region
    _
  $region9: #{attn_decoder_forward.1} parent=0 // pred_fallthru
    _
  // Predicated region
  $region10: #{attn_decoder_forward.1} parent=0 // pred_check
    _
  $region11: #{attn_decoder_forward.1} parent=0 // pred_check_branch
    %21 = sbr.rel (0) target = $region13
  $region12: #{attn_decoder_forward.1} parent=0 // pred_region
    _
  $region13: #{attn_decoder_forward.1} parent=0 // pred_fallthru
    _
  // Predicated region
  $region14: #{attn_decoder_forward.1} parent=0 // pred_check
    _
  $region15: #{attn_decoder_forward.1} parent=0 // pred_check_branch
    %23 = sbr.rel (0) target = $region17
  $region16: #{attn_decoder_forward.1} parent=0 // pred_region
    _
  $region17: #{attn_decoder_forward.1} parent=0 // pred_fallthru
    _
  // Predicated region
  $region18: #{attn_decoder_forward.1} parent=0 // pred_check
    _
  $region19: #{attn_decoder_forward.1} parent=0 // pred_check_branch
    %25 = sbr.rel (0) target = $region21
  $region20: #{attn_decoder_forward.1} parent=0 // pred_region
    _
  $region21: #{attn_decoder_forward.1} parent=0 // pred_fallthru
    _
  // Predicated region
  $region22: #{attn_decoder_forward.1} parent=0 // pred_check
    _
  $region23: #{attn_decoder_forward.1} parent=0 // pred_check_branch
    %27 = sbr.rel (0) target = $region25
  $region24: #{attn_decoder_forward.1} parent=0 // pred_region
    _
  $region25: #{attn_decoder_forward.1} parent=0 // pred_fallthru
    _
  // Predicated region
  $region26: #{attn_decoder_forward.1} parent=0 // pred_check
    _
  $region27: #{attn_decoder_forward.1} parent=0 // pred_check_branch
    %29 = sbr.rel (0) target = $region29
  $region28: #{attn_decoder_forward.1} parent=0 // pred_region
    _
  $region29: #{attn_decoder_forward.1} parent=0 // pred_fallthru
    _
  // Predicated region
  $region30: #{attn_decoder_forward.1} parent=0 // pred_check
    _
  $region31: #{attn_decoder_forward.1} parent=0 // pred_check_branch
    %31 = sbr.rel (0) target = $region33
  $region32: #{attn_decoder_forward.1} parent=0 // pred_region
    _
  $region33: #{attn_decoder_forward.1} parent=0 // pred_fallthru
    _
  // Predicated region
  $region34: #{attn_decoder_forward.1} parent=0 // pred_check
    _
  $region35: #{attn_decoder_forward.1} parent=0 // pred_check_branch
    %33 = sbr.rel (0) target = $region37
  $region36: #{attn_decoder_forward.1} parent=0 // pred_region
    _
  $region37: #{attn_decoder_forward.1} parent=0 // pred_fallthru
    _
  %v35 = vld [vmem:[%s0] sm:$0xff]
  %v36 = vld [vmem:[%s0 + $0x8] sm:$0xff]
  %v37 = vld [vmem:[%s0 + $0x10] sm:$0xff]
  %v38 = vld [vmem:[%s0 + $0x18] sm:$0xff]
  %v39 = vld [vmem:[%s0 + $0x20] sm:$0xff]
  %v40 = vld [vmem:[%s0 + $0x28] sm:$0xff]
  %v41 = vld [vmem:[%s0 + $0x30] sm:$0xff]
  %v42 = vld [vmem:[%s0 + $0x38] sm:$0xff]
  %v43 = vlaneseq
  %v44 = vand.u32 %v43, 127
  %45 = vset.pattern.permute.xlu0 0
  %46 = vperm.xlu0 %45, %v35
  %v47 = vpop.permute.xlu0 %46
  %48 = vset.pattern.permute.xlu0 0
  %49 = vperm.xlu0 %48, %v36
  %v50 = vpop.permute.xlu0 %49
  %51 = vset.pattern.permute.xlu0 0
  %52 = vperm.xlu0 %51, %v37
  %v53 = vpop.permute.xlu0 %52
  %54 = vset.pattern.permute.xlu0 0
  %55 = vperm.xlu0 %54, %v38
  %v56 = vpop.permute.xlu0 %55
  %57 = vset.pattern.permute.xlu0 0
  %58 = vperm.xlu0 %57, %v39
  %v59 = vpop.permute.xlu0 %58
  %60 = vset.pattern.permute.xlu0 0
  %61 = vperm.xlu0 %60, %v40
  %v62 = vpop.permute.xlu0 %61
  %63 = vset.pattern.permute.xlu0 0
  %64 = vperm.xlu0 %63, %v41
  %v65 = vpop.permute.xlu0 %64
  %66 = vset.pattern.permute.xlu0 0
  %67 = vperm.xlu0 %66, %v42
  %v68 = vpop.permute.xlu0 %67
  %vm69 = vcmp.eq.s32.totalorder %v47, %v44
  %vm70 = vcmp.eq.s32.totalorder %v50, %v44
  %vm71 = vcmp.eq.s32.totalorder %v53, %v44
  %vm72 = vcmp.eq.s32.totalorder %v56, %v44
  %vm73 = vcmp.eq.s32.totalorder %v59, %v44
  %vm74 = vcmp.eq.s32.totalorder %v62, %v44
  %vm75 = vcmp.eq.s32.totalorder %v65, %v44
  %vm76 = vcmp.eq.s32.totalorder %v68, %v44
  %v77 = vsel %vm69, 1, 0
  %v78 = vsel %vm70, 1, 0
  %v79 = vsel %vm71, 1, 0
  %v80 = vsel %vm72, 1, 0
  %v81 = vsel %vm73, 1, 0
  %v82 = vsel %vm74, 1, 0
  %v83 = vsel %vm75, 1, 0
  %v84 = vsel %vm76, 1, 0
  %v85 = vcvt.s32.f32 %v77
  %v86 = vcvt.s32.f32 %v78
  %v87 = vcvt.s32.f32 %v79
  %v88 = vcvt.s32.f32 %v80
  %v89 = vcvt.s32.f32 %v81
  %v90 = vcvt.s32.f32 %v82
  %v91 = vcvt.s32.f32 %v83
  %v92 = vcvt.s32.f32 %v84
  %v93 = vpack.c.bf16 %v86, %v85
  %v94 = vpack.c.bf16 %v88, %v87
  %v95 = vpack.c.bf16 %v90, %v89
  %v96 = vpack.c.bf16 %v92, %v91
  %v97 = vld [vmem:[%s1] sm:$0xf]
  %v98 = vld [vmem:[%s1 + $0x4] sm:$0xf]
  %v99 = vld [vmem:[%s1 + $0x8] sm:$0xf]
  %v100 = vld [vmem:[%s1 + $0xc] sm:$0xf]
  %v101 = vld [vmem:[%s1 + $0x10] sm:$0xf]
  %v102 = vld [vmem:[%s1 + $0x14] sm:$0xf]
  %v103 = vld [vmem:[%s1 + $0x18] sm:$0xf]
  %v104 = vld [vmem:[%s1 + $0x1c] sm:$0xf]
  %v105 = vld [vmem:[%s1 + $0x20] sm:$0xf]
  %v106 = vld [vmem:[%s1 + $0x24] sm:$0xf]
  %v107 = vld [vmem:[%s1 + $0x28] sm:$0xf]
  %v108 = vld [vmem:[%s1 + $0x2c] sm:$0xf]
  %v109 = vld [vmem:[%s1 + $0x30] sm:$0xf]
  %v110 = vld [vmem:[%s1 + $0x34] sm:$0xf]
  %v111 = vld [vmem:[%s1 + $0x38] sm:$0xf]
  %v112 = vld [vmem:[%s1 + $0x3c] sm:$0xf]
  %v129 = vunpack.c.l.b16 %v97
  %v130 = vunpack.c.l.b16 %v98
  %v131 = vunpack.c.l.b16 %v99
  %v132 = vunpack.c.l.b16 %v100
  %v133 = vunpack.c.l.b16 %v101
  %v134 = vunpack.c.l.b16 %v102
  %v135 = vunpack.c.l.b16 %v103
  %v136 = vunpack.c.l.b16 %v104
  %v137 = vunpack.c.l.b16 %v105
  %v138 = vunpack.c.l.b16 %v106
  %v139 = vunpack.c.l.b16 %v107
  %v140 = vunpack.c.l.b16 %v108
  %v141 = vunpack.c.l.b16 %v109
  %v142 = vunpack.c.l.b16 %v110
  %v143 = vunpack.c.l.b16 %v111
  %v144 = vunpack.c.l.b16 %v112
  %v145 = vpack.c.b16 %v130, %v129
  %v146 = vpack.c.b16 %v132, %v131
  %v147 = vpack.c.b16 %v134, %v133
  %v148 = vpack.c.b16 %v136, %v135
  %v149 = vpack.c.b16 %v138, %v137
  %v150 = vpack.c.b16 %v140, %v139
  %v151 = vpack.c.b16 %v142, %v141
  %v152 = vpack.c.b16 %v144, %v143
  %161 = vmatprep.subr.bf16.mxu0 0
  %162 = vmatpush1.bf16.msra.mxu0 %v145
  %163 = vmatprep.subr.bf16.mxu0 0
  %164 = vmatpush1.bf16.msra.mxu0 %v146
  %165 = vmatprep.subr.bf16.mxu0 0
  %166 = vmatpush1.bf16.msra.mxu0 %v147
  %167 = vmatprep.subr.bf16.mxu0 0
  %168 = vmatpush1.bf16.msra.mxu0 %v148
  %169 = vmatprep.subr.bf16.mxu0 0
  %170 = vmatpush1.bf16.msra.mxu0 %v149
  %171 = vmatprep.subr.bf16.mxu0 0
  %172 = vmatpush1.bf16.msra.mxu0 %v150
  %173 = vmatprep.subr.bf16.mxu0 0
  %174 = vmatpush1.bf16.msra.mxu0 %v151
  %175 = vmatprep.subr.bf16.mxu0 0
  %176 = vmatpush1.bf16.msra.mxu0 %v152
  %177 = vmatprep.subr.bf16.mxu0 0
  %178 = vmatpush1.bf16.msra.mxu0 0
  %179 = vmatprep.subr.bf16.mxu0 0
  %180 = vmatpush1.bf16.msra.mxu0 0
  %181 = vmatprep.subr.bf16.mxu0 0
  %182 = vmatpush1.bf16.msra.mxu0 0
  %183 = vmatprep.subr.bf16.mxu0 0
  %184 = vmatpush1.bf16.msra.mxu0 0
  %185 = vmatprep.subr.bf16.mxu0 0
  %186 = vmatpush1.bf16.msra.mxu0 0
  %187 = vmatprep.subr.bf16.mxu0 0
  %188 = vmatpush1.bf16.msra.mxu0 0
  %189 = vmatprep.subr.bf16.mxu0 0
  %190 = vmatpush1.bf16.msra.mxu0 0
  %191 = vmatprep.subr.bf16.mxu0 0
  %192 = vmatpush1.bf16.msra.mxu0 0
  %193 = vmatprep.mubr.bf16.mxu0 0
  %194 = vmatmul.mubr.bf16.gmra.mrb[0].mxu0 %v93
  %v195 = vpop.f32.mrb[0].mxu0
  %v196 = vadd.f32 0.0, %v195
  %v197 = vpop.f32.mrb[0].mxu0
  %v198 = vpop.f32.mrb[0].mxu0
  %v199 = vadd.f32 0.0, %v198
  %v200 = vpop.f32.mrb[0].mxu0
  %201 = vmatprep.mubr.bf16.mxu0 0
  %202 = vmatmul.mubr.bf16.gmra.mrb[0].mxu0 %v94
  %v203 = vpop.f32.mrb[0].mxu0
  %v204 = vadd.f32 0.0, %v203
  %v205 = vpop.f32.mrb[0].mxu0
  %v206 = vpop.f32.mrb[0].mxu0
  %v207 = vadd.f32 0.0, %v206
  %v208 = vpop.f32.mrb[0].mxu0
  %209 = vmatprep.mubr.bf16.mxu0 0
  %210 = vmatmul.mubr.bf16.gmra.mrb[0].mxu0 %v95
  %v211 = vpop.f32.mrb[0].mxu0
  %v212 = vadd.f32 0.0, %v211
  %v213 = vpop.f32.mrb[0].mxu0
  %v214 = vpop.f32.mrb[0].mxu0
  %v215 = vadd.f32 0.0, %v214
  %v216 = vpop.f32.mrb[0].mxu0
  %217 = vmatprep.mubr.bf16.mxu0 0
  %218 = vmatmul.mubr.bf16.gmra.mrb[0].mxu0 %v96
  %v219 = vpop.f32.mrb[0].mxu0
  %v220 = vadd.f32 0.0, %v219
  %v221 = vpop.f32.mrb[0].mxu0
  %v222 = vpop.f32.mrb[0].mxu0
  %v223 = vadd.f32 0.0, %v222
  %v224 = vpop.f32.mrb[0].mxu0
  %225 = vdwg.mxu0
  %v226 = vpack.c.bf16 %v199, %v196
  %v227 = vpack.c.bf16 %v207, %v204
  %v228 = vpack.c.bf16 %v215, %v212
  %v229 = vpack.c.bf16 %v223, %v220
  %v230 = vld [vmem:[%s3] sm:$0xff]
  %v231 = vld [vmem:[%s3 + $0x8] sm:$0xf]
  %v232 = vld [vmem:[%s3 + $0xc] sm:$0xff]
  %v233 = vld [vmem:[%s3 + $0x14] sm:$0xf]
  %v234 = vld [vmem:[%s3 + $0x18] sm:$0xff]
  %v235 = vld [vmem:[%s3 + $0x20] sm:$0xf]
  %v236 = vld [vmem:[%s3 + $0x24] sm:$0xff]
  %v237 = vld [vmem:[%s3 + $0x2c] sm:$0xf]
  %v238 = vld [vmem:[%s3 + $0x30] sm:$0xff]
  %v239 = vld [vmem:[%s3 + $0x38] sm:$0xf]
  %v240 = vld [vmem:[%s3 + $0x3c] sm:$0xff]
  %v241 = vld [vmem:[%s3 + $0x44] sm:$0xf]
  %v242 = vld [vmem:[%s3 + $0x48] sm:$0xff]
  %v243 = vld [vmem:[%s3 + $0x50] sm:$0xf]
  %v244 = vld [vmem:[%s3 + $0x54] sm:$0xff]
  %v245 = vld [vmem:[%s3 + $0x5c] sm:$0xf]
  %v246 = vld [vmem:[%s3 + $0x60] sm:$0xff]
  %v247 = vld [vmem:[%s3 + $0x68] sm:$0xf]
  %v248 = vld [vmem:[%s3 + $0x6c] sm:$0xff]
  %v249 = vld [vmem:[%s3 + $0x74] sm:$0xf]
  %v250 = vld [vmem:[%s3 + $0x78] sm:$0xff]
  %v251 = vld [vmem:[%s3 + $0x80] sm:$0xf]
  %v252 = vld [vmem:[%s3 + $0x84] sm:$0xff]
  %v253 = vld [vmem:[%s3 + $0x8c] sm:$0xf]
  %v254 = vld [vmem:[%s3 + $0x90] sm:$0xff]
  %v255 = vld [vmem:[%s3 + $0x98] sm:$0xf]
  %v256 = vld [vmem:[%s3 + $0x9c] sm:$0xff]
  %v257 = vld [vmem:[%s3 + $0xa4] sm:$0xf]
  %v258 = vld [vmem:[%s3 + $0xa8] sm:$0xff]
  %v259 = vld [vmem:[%s3 + $0xb0] sm:$0xf]
  %v260 = vld [vmem:[%s3 + $0xb4] sm:$0xff]
  %v261 = vld [vmem:[%s3 + $0xbc] sm:$0xf]
  %v262 = vld [vmem:[%s5] sm:$0x7]
  %v264 = vlaneseq
  %v265 = vshrl.u32 %v264, 7
  %v266 = vsub.s32 0, %v265
  %v267 = vrot.slane %v262, %v266
  %v268 = vlaneseq
  %v269 = vshrl.u32 %v268, 7
  %v270 = vsub.s32 1, %v269
  %v271 = vrot.slane %v262, %v270
  %v272 = vlaneseq
  %v273 = vshrl.u32 %v272, 7
  %v274 = vsub.s32 2, %v273
  %v275 = vrot.slane %v262, %v274
  %v311 = vunpack.c.l.b16 %v230
  %v312 = vunpack.c.h.b16 %v230
  %v313 = vunpack.c.l.b16 %v231
  %v314 = vunpack.c.l.b16 %v232
  %v315 = vunpack.c.h.b16 %v232
  %v316 = vunpack.c.l.b16 %v233
  %v317 = vunpack.c.l.b16 %v234
  %v318 = vunpack.c.h.b16 %v234
  %v319 = vunpack.c.l.b16 %v235
  %v320 = vunpack.c.l.b16 %v236
  %v321 = vunpack.c.h.b16 %v236
  %v322 = vunpack.c.l.b16 %v237
  %v323 = vunpack.c.l.b16 %v238
  %v324 = vunpack.c.h.b16 %v238
  %v325 = vunpack.c.l.b16 %v239
  %v326 = vunpack.c.l.b16 %v240
  %v327 = vunpack.c.h.b16 %v240
  %v328 = vunpack.c.l.b16 %v241
  %v329 = vunpack.c.l.b16 %v242
  %v330 = vunpack.c.h.b16 %v242
  %v331 = vunpack.c.l.b16 %v243
  %v332 = vunpack.c.l.b16 %v244
  %v333 = vunpack.c.h.b16 %v244
  %v334 = vunpack.c.l.b16 %v245
  %v335 = vunpack.c.l.b16 %v246
  %v336 = vunpack.c.h.b16 %v246
  %v337 = vunpack.c.l.b16 %v247
  %v338 = vunpack.c.l.b16 %v248
  %v339 = vunpack.c.h.b16 %v248
  %v340 = vunpack.c.l.b16 %v249
  %v341 = vunpack.c.l.b16 %v250
  %v342 = vunpack.c.h.b16 %v250
  %v343 = vunpack.c.l.b16 %v251
  %v344 = vunpack.c.l.b16 %v252
  %v345 = vunpack.c.h.b16 %v252
  %v346 = vunpack.c.l.b16 %v253
  %v347 = vunpack.c.l.b16 %v254
  %v348 = vunpack.c.h.b16 %v254
  %v349 = vunpack.c.l.b16 %v255
  %v350 = vunpack.c.l.b16 %v256
  %v351 = vunpack.c.h.b16 %v256
  %v352 = vunpack.c.l.b16 %v257
  %v353 = vunpack.c.l.b16 %v258
  %v354 = vunpack.c.h.b16 %v258
  %v355 = vunpack.c.l.b16 %v259
  %v356 = vunpack.c.l.b16 %v260
  %v357 = vunpack.c.h.b16 %v260
  %v358 = vunpack.c.l.b16 %v261
  %v359 = vpack.c.b16 %v314, %v311
  %v360 = vpack.c.b16 %v315, %v312
  %v361 = vpack.c.b16 %v316, %v313
  %v362 = vpack.c.b16 %v320, %v317
  %v363 = vpack.c.b16 %v321, %v318
  %v364 = vpack.c.b16 %v322, %v319
  %v365 = vpack.c.b16 %v326, %v323
  %v366 = vpack.c.b16 %v327, %v324
  %v367 = vpack.c.b16 %v328, %v325
  %v368 = vpack.c.b16 %v332, %v329
  %v369 = vpack.c.b16 %v333, %v330
  %v370 = vpack.c.b16 %v334, %v331
  %v371 = vpack.c.b16 %v338, %v335
  %v372 = vpack.c.b16 %v339, %v336
  %v373 = vpack.c.b16 %v340, %v337
  %v374 = vpack.c.b16 %v344, %v341
  %v375 = vpack.c.b16 %v345, %v342
  %v376 = vpack.c.b16 %v346, %v343
  %v377 = vpack.c.b16 %v350, %v347
  %v378 = vpack.c.b16 %v351, %v348
  %v379 = vpack.c.b16 %v352, %v349
  %v380 = vpack.c.b16 %v356, %v353
  %v381 = vpack.c.b16 %v357, %v354
  %v382 = vpack.c.b16 %v358, %v355
  %407 = vmatprep.subr.bf16.mxu0 %v360
  %408 = vmatpush1.bf16.msra.mxu0 %v359
  %409 = vmatprep.subr.bf16.mxu0 %v363
  %410 = vmatpush1.bf16.msra.mxu0 %v362
  %411 = vmatprep.subr.bf16.mxu0 %v366
  %412 = vmatpush1.bf16.msra.mxu0 %v365
  %413 = vmatprep.subr.bf16.mxu0 %v369
  %414 = vmatpush1.bf16.msra.mxu0 %v368
  %415 = vmatprep.subr.bf16.mxu0 %v372
  %416 = vmatpush1.bf16.msra.mxu0 %v371
  %417 = vmatprep.subr.bf16.mxu0 %v375
  %418 = vmatpush1.bf16.msra.mxu0 %v374
  %419 = vmatprep.subr.bf16.mxu0 %v378
  %420 = vmatpush1.bf16.msra.mxu0 %v377
  %421 = vmatprep.subr.bf16.mxu0 %v381
  %422 = vmatpush1.bf16.msra.mxu0 %v380
  %423 = vmatprep.subr.bf16.mxu0 0
  %424 = vmatpush1.bf16.msra.mxu0 0
  %425 = vmatprep.subr.bf16.mxu0 0
  %426 = vmatpush1.bf16.msra.mxu0 0
  %427 = vmatprep.subr.bf16.mxu0 0
  %428 = vmatpush1.bf16.msra.mxu0 0
  %429 = vmatprep.subr.bf16.mxu0 0
  %430 = vmatpush1.bf16.msra.mxu0 0
  %431 = vmatprep.subr.bf16.mxu0 0
  %432 = vmatpush1.bf16.msra.mxu0 0
  %433 = vmatprep.subr.bf16.mxu0 0
  %434 = vmatpush1.bf16.msra.mxu0 0
  %435 = vmatprep.subr.bf16.mxu0 0
  %436 = vmatpush1.bf16.msra.mxu0 0
  %437 = vmatprep.subr.bf16.mxu0 0
  %438 = vmatpush1.bf16.msra.mxu0 0
  %439 = vmatprep.mubr.bf16.mxu0 0
  %440 = vmatmul.mubr.bf16.gmra.mrb[0].mxu0 %v226
  %v441 = vpop.f32.mrb[0].mxu0
  %v442 = vadd.f32 %v267, %v441
  %v443 = vpop.f32.mrb[0].mxu0
  %v444 = vadd.f32 %v271, %v443
  %v445 = vpop.f32.mrb[0].mxu0
  %v446 = vadd.f32 %v267, %v445
  %v447 = vpop.f32.mrb[0].mxu0
  %v448 = vadd.f32 %v271, %v447
  %449 = vmatprep.mubr.bf16.mxu0 0
  %450 = vmatmul.mubr.bf16.gmra.mrb[0].mxu0 %v227
  %v451 = vpop.f32.mrb[0].mxu0
  %v452 = vadd.f32 %v267, %v451
  %v453 = vpop.f32.mrb[0].mxu0
  %v454 = vadd.f32 %v271, %v453
  %v455 = vpop.f32.mrb[0].mxu0
  %v456 = vadd.f32 %v267, %v455
  %v457 = vpop.f32.mrb[0].mxu0
  %v458 = vadd.f32 %v271, %v457
  %459 = vmatprep.mubr.bf16.mxu0 0
  %460 = vmatmul.mubr.bf16.gmra.mrb[0].mxu0 %v228
  %v461 = vpop.f32.mrb[0].mxu0
  %v462 = vadd.f32 %v267, %v461
  %v463 = vpop.f32.mrb[0].mxu0
  %v464 = vadd.f32 %v271, %v463
  %v465 = vpop.f32.mrb[0].mxu0
  %v466 = vadd.f32 %v267, %v465
  %v467 = vpop.f32.mrb[0].mxu0
  %v468 = vadd.f32 %v271, %v467
  %469 = vmatprep.mubr.bf16.mxu0 0
  %470 = vmatmul.mubr.bf16.gmra.mrb[0].mxu0 %v229
  %v471 = vpop.f32.mrb[0].mxu0
  %v472 = vadd.f32 %v267, %v471
  %v473 = vpop.f32.mrb[0].mxu0
  %v474 = vadd.f32 %v271, %v473
  %v475 = vpop.f32.mrb[0].mxu0
  %v476 = vadd.f32 %v267, %v475
  %v477 = vpop.f32.mrb[0].mxu0
  %v478 = vadd.f32 %v271, %v477
  %479 = vdwg.mxu0
  %480 = vmatprep.subr.bf16.mxu0 0
  %481 = vmatpush1.bf16.msra.mxu0 %v361
  %482 = vmatprep.subr.bf16.mxu0 0
  %483 = vmatpush1.bf16.msra.mxu0 %v364
  %484 = vmatprep.subr.bf16.mxu0 0
  %485 = vmatpush1.bf16.msra.mxu0 %v367
  %486 = vmatprep.subr.bf16.mxu0 0
  %487 = vmatpush1.bf16.msra.mxu0 %v370
  %488 = vmatprep.subr.bf16.mxu0 0
  %489 = vmatpush1.bf16.msra.mxu0 %v373
  %490 = vmatprep.subr.bf16.mxu0 0
  %491 = vmatpush1.bf16.msra.mxu0 %v376
  %492 = vmatprep.subr.bf16.mxu0 0
  %493 = vmatpush1.bf16.msra.mxu0 %v379
  %494 = vmatprep.subr.bf16.mxu0 0
  %495 = vmatpush1.bf16.msra.mxu0 %v382
  %496 = vmatprep.subr.bf16.mxu0 0
  %497 = vmatpush1.bf16.msra.mxu0 0
  %498 = vmatprep.subr.bf16.mxu0 0
  %499 = vmatpush1.bf16.msra.mxu0 0
  %500 = vmatprep.subr.bf16.mxu0 0
  %501 = vmatpush1.bf16.msra.mxu0 0
  %502 = vmatprep.subr.bf16.mxu0 0
  %503 = vmatpush1.bf16.msra.mxu0 0
  %504 = vmatprep.subr.bf16.mxu0 0
  %505 = vmatpush1.bf16.msra.mxu0 0
  %506 = vmatprep.subr.bf16.mxu0 0
  %507 = vmatpush1.bf16.msra.mxu0 0
  %508 = vmatprep.subr.bf16.mxu0 0
  %509 = vmatpush1.bf16.msra.mxu0 0
  %510 = vmatprep.subr.bf16.mxu0 0
  %511 = vmatpush1.bf16.msra.mxu0 0
  %512 = vmatprep.mubr.bf16.mxu0 0
  %513 = vmatmul.mubr.bf16.gmra.mrb[0].mxu0 %v226
  %v514 = vpop.f32.mrb[0].mxu0
  %v515 = vadd.f32 %v275, %v514
  %v516 = vpop.f32.mrb[0].mxu0
  %v517 = vpop.f32.mrb[0].mxu0
  %v518 = vadd.f32 %v275, %v517
  %v519 = vpop.f32.mrb[0].mxu0
  %520 = vmatprep.mubr.bf16.mxu0 0
  %521 = vmatmul.mubr.bf16.gmra.mrb[0].mxu0 %v227
  %v522 = vpop.f32.mrb[0].mxu0
  %v523 = vadd.f32 %v275, %v522
  %v524 = vpop.f32.mrb[0].mxu0
  %v525 = vpop.f32.mrb[0].mxu0
  %v526 = vadd.f32 %v275, %v525
  %v527 = vpop.f32.mrb[0].mxu0
  %528 = vmatprep.mubr.bf16.mxu0 0
  %529 = vmatmul.mubr.bf16.gmra.mrb[0].mxu0 %v228
  %v530 = vpop.f32.mrb[0].mxu0
  %v531 = vadd.f32 %v275, %v530
  %v532 = vpop.f32.mrb[0].mxu0
  %v533 = vpop.f32.mrb[0].mxu0
  %v534 = vadd.f32 %v275, %v533
  %v535 = vpop.f32.mrb[0].mxu0
  %536 = vmatprep.mubr.bf16.mxu0 0
  %537 = vmatmul.mubr.bf16.gmra.mrb[0].mxu0 %v229
  %v538 = vpop.f32.mrb[0].mxu0
  %v539 = vadd.f32 %v275, %v538
  %v540 = vpop.f32.mrb[0].mxu0
  %v541 = vpop.f32.mrb[0].mxu0
  %v542 = vadd.f32 %v275, %v541
  %v543 = vpop.f32.mrb[0].mxu0
  %544 = vdwg.mxu0
  %545 = vst [vmem:[#allocation2] sm:$0xff] %v442
  %546 = vst [vmem:[#allocation2 + $0x8] sm:$0xff] %v444
  %547 = vst [vmem:[#allocation2 + $0x10] sm:$0xff] %v515
  %548 = vst [vmem:[#allocation2 + $0x18] sm:$0xff] %v446
  %549 = vst [vmem:[#allocation2 + $0x20] sm:$0xff] %v448
  %550 = vst [vmem:[#allocation2 + $0x28] sm:$0xff] %v518
  %551 = vst [vmem:[#allocation2 + $0x30] sm:$0xff] %v452
  %552 = vst [vmem:[#allocation2 + $0x38] sm:$0xff] %v454
  %553 = vst [vmem:[#allocation2 + $0x40] sm:$0xff] %v523
  %554 = vst [vmem:[#allocation2 + $0x48] sm:$0xff] %v456
  %555 = vst [vmem:[#allocation2 + $0x50] sm:$0xff] %v458
  %556 = vst [vmem:[#allocation2 + $0x58] sm:$0xff] %v526
  %557 = vst [vmem:[#allocation2 + $0x60] sm:$0xff] %v462
  %558 = vst [vmem:[#allocation2 + $0x68] sm:$0xff] %v464
  %559 = vst [vmem:[#allocation2 + $0x70] sm:$0xff] %v531
  %560 = vst [vmem:[#allocation2 + $0x78] sm:$0xff] %v466
  %561 = vst [vmem:[#allocation2 + $0x80] sm:$0xff] %v468
  %562 = vst [vmem:[#allocation2 + $0x88] sm:$0xff] %v534
  %563 = vst [vmem:[#allocation2 + $0x90] sm:$0xff] %v472
  %564 = vst [vmem:[#allocation2 + $0x98] sm:$0xff] %v474
  %565 = vst [vmem:[#allocation2 + $0xa0] sm:$0xff] %v539
  %566 = vst [vmem:[#allocation2 + $0xa8] sm:$0xff] %v476
  %567 = vst [vmem:[#allocation2 + $0xb0] sm:$0xff] %v478
  %568 = vst [vmem:[#allocation2 + $0xb8] sm:$0xff] %v542
  %v569 = vld [vmem:[%s4] sm:$0xff]
  %v570 = vld [vmem:[%s4 + $0x8] sm:$0xf]
  %v571 = vld [vmem:[%s4 + $0xc] sm:$0xff]
  %v572 = vld [vmem:[%s4 + $0x14] sm:$0xf]
  %v573 = vld [vmem:[%s4 + $0x18] sm:$0xff]
  %v574 = vld [vmem:[%s4 + $0x20] sm:$0xf]
  %v575 = vld [vmem:[%s4 + $0x24] sm:$0xff]
  %v576 = vld [vmem:[%s4 + $0x2c] sm:$0xf]
  %v577 = vld [vmem:[%s4 + $0x30] sm:$0xff]
  %v578 = vld [vmem:[%s4 + $0x38] sm:$0xf]
  %v579 = vld [vmem:[%s4 + $0x3c] sm:$0xff]
  %v580 = vld [vmem:[%s4 + $0x44] sm:$0xf]
  %v581 = vld [vmem:[%s4 + $0x48] sm:$0xff]
  %v582 = vld [vmem:[%s4 + $0x50] sm:$0xf]
  %v583 = vld [vmem:[%s4 + $0x54] sm:$0xff]
  %v584 = vld [vmem:[%s4 + $0x5c] sm:$0xf]
  %v585 = vld [vmem:[%s4 + $0x60] sm:$0xff]
  %v586 = vld [vmem:[%s4 + $0x68] sm:$0xf]
  %v587 = vld [vmem:[%s4 + $0x6c] sm:$0xff]
  %v588 = vld [vmem:[%s4 + $0x74] sm:$0xf]
  %v589 = vld [vmem:[%s4 + $0x78] sm:$0xff]
  %v590 = vld [vmem:[%s4 + $0x80] sm:$0xf]
  %v591 = vld [vmem:[%s4 + $0x84] sm:$0xff]
  %v592 = vld [vmem:[%s4 + $0x8c] sm:$0xf]
  %v593 = vld [vmem:[%s4 + $0x90] sm:$0xff]
  %v594 = vld [vmem:[%s4 + $0x98] sm:$0xf]
  %v595 = vld [vmem:[%s4 + $0x9c] sm:$0xff]
  %v596 = vld [vmem:[%s4 + $0xa4] sm:$0xf]
  %v597 = vld [vmem:[%s4 + $0xa8] sm:$0xff]
  %v598 = vld [vmem:[%s4 + $0xb0] sm:$0xf]
  %v599 = vld [vmem:[%s4 + $0xb4] sm:$0xff]
  %v600 = vld [vmem:[%s4 + $0xbc] sm:$0xf]
  %v601 = vld [vmem:[%s6] sm:$0x1]
  %v603 = vlaneseq
  %v604 = vshrl.u32 %v603, 7
  %v605 = vsub.s32 0, %v604
  %v606 = vrot.slane %v601, %v605
  %v608 = vld [vmem:[%s2] sm:$0xff]
  %v609 = vpack.c.bf16 %v608, %v608
  %v642 = vunpack.c.l.b16 %v569
  %v643 = vunpack.c.h.b16 %v569
  %v644 = vunpack.c.l.b16 %v570
  %v645 = vunpack.c.l.b16 %v571
  %v646 = vunpack.c.h.b16 %v571
  %v647 = vunpack.c.l.b16 %v572
  %v648 = vunpack.c.l.b16 %v573
  %v649 = vunpack.c.h.b16 %v573
  %v650 = vunpack.c.l.b16 %v574
  %v651 = vunpack.c.l.b16 %v575
  %v652 = vunpack.c.h.b16 %v575
  %v653 = vunpack.c.l.b16 %v576
  %v654 = vunpack.c.l.b16 %v577
  %v655 = vunpack.c.h.b16 %v577
  %v656 = vunpack.c.l.b16 %v578
  %v657 = vunpack.c.l.b16 %v579
  %v658 = vunpack.c.h.b16 %v579
  %v659 = vunpack.c.l.b16 %v580
  %v660 = vunpack.c.l.b16 %v581
  %v661 = vunpack.c.h.b16 %v581
  %v662 = vunpack.c.l.b16 %v582
  %v663 = vunpack.c.l.b16 %v583
  %v664 = vunpack.c.h.b16 %v583
  %v665 = vunpack.c.l.b16 %v584
  %v666 = vunpack.c.l.b16 %v585
  %v667 = vunpack.c.h.b16 %v585
  %v668 = vunpack.c.l.b16 %v586
  %v669 = vunpack.c.l.b16 %v587
  %v670 = vunpack.c.h.b16 %v587
  %v671 = vunpack.c.l.b16 %v588
  %v672 = vunpack.c.l.b16 %v589
  %v673 = vunpack.c.h.b16 %v589
  %v674 = vunpack.c.l.b16 %v590
  %v675 = vunpack.c.l.b16 %v591
  %v676 = vunpack.c.h.b16 %v591
  %v677 = vunpack.c.l.b16 %v592
  %v678 = vunpack.c.l.b16 %v593
  %v679 = vunpack.c.h.b16 %v593
  %v680 = vunpack.c.l.b16 %v594
  %v681 = vunpack.c.l.b16 %v595
  %v682 = vunpack.c.h.b16 %v595
  %v683 = vunpack.c.l.b16 %v596
  %v684 = vunpack.c.l.b16 %v597
  %v685 = vunpack.c.h.b16 %v597
  %v686 = vunpack.c.l.b16 %v598
  %v687 = vunpack.c.l.b16 %v599
  %v688 = vunpack.c.h.b16 %v599
  %v689 = vunpack.c.l.b16 %v600
  %v690 = vpack.c.b16 %v645, %v642
  %v691 = vpack.c.b16 %v646, %v643
  %v692 = vpack.c.b16 %v647, %v644
  %v693 = vpack.c.b16 %v651, %v648
  %v694 = vpack.c.b16 %v652, %v649
  %v695 = vpack.c.b16 %v653, %v650
  %v696 = vpack.c.b16 %v657, %v654
  %v697 = vpack.c.b16 %v658, %v655
  %v698 = vpack.c.b16 %v659, %v656
  %v699 = vpack.c.b16 %v663, %v660
  %v700 = vpack.c.b16 %v664, %v661
  %v701 = vpack.c.b16 %v665, %v662
  %v702 = vpack.c.b16 %v669, %v666
  %v703 = vpack.c.b16 %v670, %v667
  %v704 = vpack.c.b16 %v671, %v668
  %v705 = vpack.c.b16 %v675, %v672
  %v706 = vpack.c.b16 %v676, %v673
  %v707 = vpack.c.b16 %v677, %v674
  %v708 = vpack.c.b16 %v681, %v678
  %v709 = vpack.c.b16 %v682, %v679
  %v710 = vpack.c.b16 %v683, %v680
  %v711 = vpack.c.b16 %v687, %v684
  %v712 = vpack.c.b16 %v688, %v685
  %v713 = vpack.c.b16 %v689, %v686
  %738 = vmatprep.subr.bf16.mxu0 %v691
  %739 = vmatpush1.bf16.msra.mxu0 %v690
  %740 = vmatprep.subr.bf16.mxu0 %v694
  %741 = vmatpush1.bf16.msra.mxu0 %v693
  %742 = vmatprep.subr.bf16.mxu0 %v697
  %743 = vmatpush1.bf16.msra.mxu0 %v696
  %744 = vmatprep.subr.bf16.mxu0 %v700
  %745 = vmatpush1.bf16.msra.mxu0 %v699
  %746 = vmatprep.subr.bf16.mxu0 %v703
  %747 = vmatpush1.bf16.msra.mxu0 %v702
  %748 = vmatprep.subr.bf16.mxu0 %v706
  %749 = vmatpush1.bf16.msra.mxu0 %v705
  %750 = vmatprep.subr.bf16.mxu0 %v709
  %751 = vmatpush1.bf16.msra.mxu0 %v708
  %752 = vmatprep.subr.bf16.mxu0 %v712
  %753 = vmatpush1.bf16.msra.mxu0 %v711
  %754 = vmatprep.subr.bf16.mxu0 0
  %755 = vmatpush1.bf16.msra.mxu0 0
  %756 = vmatprep.subr.bf16.mxu0 0
  %757 = vmatpush1.bf16.msra.mxu0 0
  %758 = vmatprep.subr.bf16.mxu0 0
  %759 = vmatpush1.bf16.msra.mxu0 0
  %760 = vmatprep.subr.bf16.mxu0 0
  %761 = vmatpush1.bf16.msra.mxu0 0
  %762 = vmatprep.subr.bf16.mxu0 0
  %763 = vmatpush1.bf16.msra.mxu0 0
  %764 = vmatprep.subr.bf16.mxu0 0
  %765 = vmatpush1.bf16.msra.mxu0 0
  %766 = vmatprep.subr.bf16.mxu0 0
  %767 = vmatpush1.bf16.msra.mxu0 0
  %768 = vmatprep.subr.bf16.mxu0 0
  %769 = vmatpush1.bf16.msra.mxu0 0
  %770 = vmatprep.mubr.bf16.mxu0 0
  %771 = vmatmul.mubr.bf16.gmra.mrb[0].mxu0 %v609
  %v772 = vpop.f32.mrb[0].mxu0
  %v773 = vadd.f32 0.0, %v772
  %v774 = vpop.f32.mrb[0].mxu0
  %v775 = vadd.f32 0.0, %v774
  %v776 = vpop.f32.mrb[0].mxu0
  %v777 = vpop.f32.mrb[0].mxu0
  %778 = vdwg.mxu0
  %779 = vmatprep.subr.bf16.mxu0 0
  %780 = vmatpush1.bf16.msra.mxu0 %v692
  %781 = vmatprep.subr.bf16.mxu0 0
  %782 = vmatpush1.bf16.msra.mxu0 %v695
  %783 = vmatprep.subr.bf16.mxu0 0
  %784 = vmatpush1.bf16.msra.mxu0 %v698
  %785 = vmatprep.subr.bf16.mxu0 0
  %786 = vmatpush1.bf16.msra.mxu0 %v701
  %787 = vmatprep.subr.bf16.mxu0 0
  %788 = vmatpush1.bf16.msra.mxu0 %v704
  %789 = vmatprep.subr.bf16.mxu0 0
  %790 = vmatpush1.bf16.msra.mxu0 %v707
  %791 = vmatprep.subr.bf16.mxu0 0
  %792 = vmatpush1.bf16.msra.mxu0 %v710
  %793 = vmatprep.subr.bf16.mxu0 0
  %794 = vmatpush1.bf16.msra.mxu0 %v713
  %795 = vmatprep.subr.bf16.mxu0 0
  %796 = vmatpush1.bf16.msra.mxu0 0
  %797 = vmatprep.subr.bf16.mxu0 0
  %798 = vmatpush1.bf16.msra.mxu0 0
  %799 = vmatprep.subr.bf16.mxu0 0
  %800 = vmatpush1.bf16.msra.mxu0 0
  %801 = vmatprep.subr.bf16.mxu0 0
  %802 = vmatpush1.bf16.msra.mxu0 0
  %803 = vmatprep.subr.bf16.mxu0 0
  %804 = vmatpush1.bf16.msra.mxu0 0
  %805 = vmatprep.subr.bf16.mxu0 0
  %806 = vmatpush1.bf16.msra.mxu0 0
  %807 = vmatprep.subr.bf16.mxu0 0
  %808 = vmatpush1.bf16.msra.mxu0 0
  %809 = vmatprep.subr.bf16.mxu0 0
  %810 = vmatpush1.bf16.msra.mxu0 0
  %811 = vmatprep.mubr.bf16.mxu0 0
  %812 = vmatmul.mubr.bf16.gmra.mrb[0].mxu0 %v609
  %v813 = vpop.f32.mrb[0].mxu0
  %v814 = vadd.f32 0.0, %v813
  %v815 = vpop.f32.mrb[0].mxu0
  %v816 = vpop.f32.mrb[0].mxu0
  %v817 = vpop.f32.mrb[0].mxu0
  %818 = vdwg.mxu0
  %v819 = vld [vmem:[#allocation2] sm:$0xff]
  %v820 = vld [vmem:[#allocation2 + $0x8] sm:$0xff]
  %v821 = vld [vmem:[#allocation2 + $0x10] sm:$0xff]
  %v822 = vadd.f32 %v819, %v773
  %v823 = vxor.u32 %v822, 2147483648
  %v824 = vmul.f32 %v823, 1.442695
  %v825 = vpow.pop %v824
  %v826 = vadd.f32 %v825, 1.0
  %v827 = vrcp.pop %v826
  %v828 = vmul.f32 1.0, %v827
  %v829 = vadd.f32 %v820, %v775
  %v830 = vxor.u32 %v829, 2147483648
  %v831 = vmul.f32 %v830, 1.442695
  %v832 = vpow.pop %v831
  %v833 = vadd.f32 %v832, 1.0
  %v834 = vrcp.pop %v833
  %v835 = vmul.f32 1.0, %v834
  %v836 = vadd.f32 %v814, %v606
  %v837 = vmul.f32 %v828, %v836
  %v838 = vadd.f32 %v821, %v837
  %v839 = vtanh.pop %v838
  %v840 = vsub.f32 1.0, %v835
  %v841 = vmul.f32 %v840, %v839
  %v842 = vmul.f32 %v835, %v608
  %v843 = vadd.f32 %v841, %v842
  %844 = vst [vmem:[#allocation3] sm:$0xff] %v843
  %v845 = vpack.c.bf16 %v843, %v843
  %846 = vmatprep.subr.bf16.mxu0 %v691
  %847 = vmatpush1.bf16.msra.mxu0 %v690
  %848 = vmatprep.subr.bf16.mxu0 %v694
  %849 = vmatpush1.bf16.msra.mxu0 %v693
  %850 = vmatprep.subr.bf16.mxu0 %v697
  %851 = vmatpush1.bf16.msra.mxu0 %v696
  %852 = vmatprep.subr.bf16.mxu0 %v700
  %853 = vmatpush1.bf16.msra.mxu0 %v699
  %854 = vmatprep.subr.bf16.mxu0 %v703
  %855 = vmatpush1.bf16.msra.mxu0 %v702
  %856 = vmatprep.subr.bf16.mxu0 %v706
  %857 = vmatpush1.bf16.msra.mxu0 %v705
  %858 = vmatprep.subr.bf16.mxu0 %v709
  %859 = vmatpush1.bf16.msra.mxu0 %v708
  %860 = vmatprep.subr.bf16.mxu0 %v712
  %861 = vmatpush1.bf16.msra.mxu0 %v711
  %862 = vmatprep.subr.bf16.mxu0 0
  %863 = vmatpush1.bf16.msra.mxu0 0
  %864 = vmatprep.subr.bf16.mxu0 0
  %865 = vmatpush1.bf16.msra.mxu0 0
  %866 = vmatprep.subr.bf16.mxu0 0
  %867 = vmatpush1.bf16.msra.mxu0 0
  %868 = vmatprep.subr.bf16.mxu0 0
  %869 = vmatpush1.bf16.msra.mxu0 0
  %870 = vmatprep.subr.bf16.mxu0 0
  %871 = vmatpush1.bf16.msra.mxu0 0
  %872 = vmatprep.subr.bf16.mxu0 0
  %873 = vmatpush1.bf16.msra.mxu0 0
  %874 = vmatprep.subr.bf16.mxu0 0
  %875 = vmatpush1.bf16.msra.mxu0 0
  %876 = vmatprep.subr.bf16.mxu0 0
  %877 = vmatpush1.bf16.msra.mxu0 0
  %878 = vmatprep.mubr.bf16.mxu0 0
  %879 = vmatmul.mubr.bf16.gmra.mrb[0].mxu0 %v845
  %v880 = vpop.f32.mrb[0].mxu0
  %v881 = vadd.f32 0.0, %v880
  %v882 = vpop.f32.mrb[0].mxu0
  %v883 = vadd.f32 0.0, %v882
  %v884 = vpop.f32.mrb[0].mxu0
  %v885 = vpop.f32.mrb[0].mxu0
  %886 = vdwg.mxu0
  %887 = vmatprep.subr.bf16.mxu0 0
  %888 = vmatpush1.bf16.msra.mxu0 %v692
  %889 = vmatprep.subr.bf16.mxu0 0
  %890 = vmatpush1.bf16.msra.mxu0 %v695
  %891 = vmatprep.subr.bf16.mxu0 0
  %892 = vmatpush1.bf16.msra.mxu0 %v698
  %893 = vmatprep.subr.bf16.mxu0 0
  %894 = vmatpush1.bf16.msra.mxu0 %v701
  %895 = vmatprep.subr.bf16.mxu0 0
  %896 = vmatpush1.bf16.msra.mxu0 %v704
  %897 = vmatprep.subr.bf16.mxu0 0
  %898 = vmatpush1.bf16.msra.mxu0 %v707
  %899 = vmatprep.subr.bf16.mxu0 0
  %900 = vmatpush1.bf16.msra.mxu0 %v710
  %901 = vmatprep.subr.bf16.mxu0 0
  %902 = vmatpush1.bf16.msra.mxu0 %v713
  %903 = vmatprep.subr.bf16.mxu0 0
  %904 = vmatpush1.bf16.msra.mxu0 0
  %905 = vmatprep.subr.bf16.mxu0 0
  %906 = vmatpush1.bf16.msra.mxu0 0
  %907 = vmatprep.subr.bf16.mxu0 0
  %908 = vmatpush1.bf16.msra.mxu0 0
  %909 = vmatprep.subr.bf16.mxu0 0
  %910 = vmatpush1.bf16.msra.mxu0 0
  %911 = vmatprep.subr.bf16.mxu0 0
  %912 = vmatpush1.bf16.msra.mxu0 0
  %913 = vmatprep.subr.bf16.mxu0 0
  %914 = vmatpush1.bf16.msra.mxu0 0
  %915 = vmatprep.subr.bf16.mxu0 0
  %916 = vmatpush1.bf16.msra.mxu0 0
  %917 = vmatprep.subr.bf16.mxu0 0
  %918 = vmatpush1.bf16.msra.mxu0 0
  %919 = vmatprep.mubr.bf16.mxu0 0
  %920 = vmatmul.mubr.bf16.gmra.mrb[0].mxu0 %v845
  %v921 = vpop.f32.mrb[0].mxu0
  %v922 = vadd.f32 0.0, %v921
  %v923 = vpop.f32.mrb[0].mxu0
  %v924 = vpop.f32.mrb[0].mxu0
  %v925 = vpop.f32.mrb[0].mxu0
  %926 = vdwg.mxu0
  %v927 = vld [vmem:[#allocation2 + $0x18] sm:$0xff]
  %v928 = vld [vmem:[#allocation2 + $0x20] sm:$0xff]
  %v929 = vld [vmem:[#allocation2 + $0x28] sm:$0xff]
  %v930 = vadd.f32 %v927, %v881
  %v931 = vxor.u32 %v930, 2147483648
  %v932 = vmul.f32 %v931, 1.442695
  %v933 = vpow.pop %v932
  %v934 = vadd.f32 %v933, 1.0
  %v935 = vrcp.pop %v934
  %v936 = vmul.f32 1.0, %v935
  %v937 = vadd.f32 %v928, %v883
  %v938 = vxor.u32 %v937, 2147483648
  %v939 = vmul.f32 %v938, 1.442695
  %v940 = vpow.pop %v939
  %v941 = vadd.f32 %v940, 1.0
  %v942 = vrcp.pop %v941
  %v943 = vmul.f32 1.0, %v942
  %v944 = vadd.f32 %v922, %v606
  %v945 = vmul.f32 %v936, %v944
  %v946 = vadd.f32 %v929, %v945
  %v947 = vtanh.pop %v946
  %v948 = vsub.f32 1.0, %v943
  %v949 = vmul.f32 %v948, %v947
  %v950 = vmul.f32 %v943, %v843
  %v951 = vadd.f32 %v949, %v950
  %952 = vst [vmem:[#allocation3 + $0x8] sm:$0xff] %v951
  %v953 = vpack.c.bf16 %v951, %v951
  %954 = vmatprep.subr.bf16.mxu0 %v691
  %955 = vmatpush1.bf16.msra.mxu0 %v690
  %956 = vmatprep.subr.bf16.mxu0 %v694
  %957 = vmatpush1.bf16.msra.mxu0 %v693
  %958 = vmatprep.subr.bf16.mxu0 %v697
  %959 = vmatpush1.bf16.msra.mxu0 %v696
  %960 = vmatprep.subr.bf16.mxu0 %v700
  %961 = vmatpush1.bf16.msra.mxu0 %v699
  %962 = vmatprep.subr.bf16.mxu0 %v703
  %963 = vmatpush1.bf16.msra.mxu0 %v702
  %964 = vmatprep.subr.bf16.mxu0 %v706
  %965 = vmatpush1.bf16.msra.mxu0 %v705
  %966 = vmatprep.subr.bf16.mxu0 %v709
  %967 = vmatpush1.bf16.msra.mxu0 %v708
  %968 = vmatprep.subr.bf16.mxu0 %v712
  %969 = vmatpush1.bf16.msra.mxu0 %v711
  %970 = vmatprep.subr.bf16.mxu0 0
  %971 = vmatpush1.bf16.msra.mxu0 0
  %972 = vmatprep.subr.bf16.mxu0 0
  %973 = vmatpush1.bf16.msra.mxu0 0
  %974 = vmatprep.subr.bf16.mxu0 0
  %975 = vmatpush1.bf16.msra.mxu0 0
  %976 = vmatprep.subr.bf16.mxu0 0
  %977 = vmatpush1.bf16.msra.mxu0 0
  %978 = vmatprep.subr.bf16.mxu0 0
  %979 = vmatpush1.bf16.msra.mxu0 0
  %980 = vmatprep.subr.bf16.mxu0 0
  %981 = vmatpush1.bf16.msra.mxu0 0
  %982 = vmatprep.subr.bf16.mxu0 0
  %983 = vmatpush1.bf16.msra.mxu0 0
  %984 = vmatprep.subr.bf16.mxu0 0
  %985 = vmatpush1.bf16.msra.mxu0 0
  %986 = vmatprep.mubr.bf16.mxu0 0
  %987 = vmatmul.mubr.bf16.gmra.mrb[0].mxu0 %v953
  %v988 = vpop.f32.mrb[0].mxu0
  %v989 = vadd.f32 0.0, %v988
  %v990 = vpop.f32.mrb[0].mxu0
  %v991 = vadd.f32 0.0, %v990
  %v992 = vpop.f32.mrb[0].mxu0
  %v993 = vpop.f32.mrb[0].mxu0
  %994 = vdwg.mxu0
  %995 = vmatprep.subr.bf16.mxu0 0
  %996 = vmatpush1.bf16.msra.mxu0 %v692
  %997 = vmatprep.subr.bf16.mxu0 0
  %998 = vmatpush1.bf16.msra.mxu0 %v695
  %999 = vmatprep.subr.bf16.mxu0 0
  %1000 = vmatpush1.bf16.msra.mxu0 %v698
  %1001 = vmatprep.subr.bf16.mxu0 0
  %1002 = vmatpush1.bf16.msra.mxu0 %v701
  %1003 = vmatprep.subr.bf16.mxu0 0
  %1004 = vmatpush1.bf16.msra.mxu0 %v704
  %1005 = vmatprep.subr.bf16.mxu0 0
  %1006 = vmatpush1.bf16.msra.mxu0 %v707
  %1007 = vmatprep.subr.bf16.mxu0 0
  %1008 = vmatpush1.bf16.msra.mxu0 %v710
  %1009 = vmatprep.subr.bf16.mxu0 0
  %1010 = vmatpush1.bf16.msra.mxu0 %v713
  %1011 = vmatprep.subr.bf16.mxu0 0
  %1012 = vmatpush1.bf16.msra.mxu0 0
  %1013 = vmatprep.subr.bf16.mxu0 0
  %1014 = vmatpush1.bf16.msra.mxu0 0
  %1015 = vmatprep.subr.bf16.mxu0 0
  %1016 = vmatpush1.bf16.msra.mxu0 0
  %1017 = vmatprep.subr.bf16.mxu0 0
  %1018 = vmatpush1.bf16.msra.mxu0 0
  %1019 = vmatprep.subr.bf16.mxu0 0
  %1020 = vmatpush1.bf16.msra.mxu0 0
  %1021 = vmatprep.subr.bf16.mxu0 0
  %1022 = vmatpush1.bf16.msra.mxu0 0
  %1023 = vmatprep.subr.bf16.mxu0 0
  %1024 = vmatpush1.bf16.msra.mxu0 0
  %1025 = vmatprep.subr.bf16.mxu0 0
  %1026 = vmatpush1.bf16.msra.mxu0 0
  %1027 = vmatprep.mubr.bf16.mxu0 0
  %1028 = vmatmul.mubr.bf16.gmra.mrb[0].mxu0 %v953
  %v1029 = vpop.f32.mrb[0].mxu0
  %v1030 = vadd.f32 0.0, %v1029
  %v1031 = vpop.f32.mrb[0].mxu0
  %v1032 = vpop.f32.mrb[0].mxu0
  %v1033 = vpop.f32.mrb[0].mxu0
  %1034 = vdwg.mxu0
  %v1035 = vld [vmem:[#allocation2 + $0x30] sm:$0xff]
  %v1036 = vld [vmem:[#allocation2 + $0x38] sm:$0xff]
  %v1037 = vld [vmem:[#allocation2 + $0x40] sm:$0xff]
  %v1038 = vadd.f32 %v1035, %v989
  %v1039 = vxor.u32 %v1038, 2147483648
  %v1040 = vmul.f32 %v1039, 1.442695
  %v1041 = vpow.pop %v1040
  %v1042 = vadd.f32 %v1041, 1.0
  %v1043 = vrcp.pop %v1042
  %v1044 = vmul.f32 1.0, %v1043
  %v1045 = vadd.f32 %v1036, %v991
  %v1046 = vxor.u32 %v1045, 2147483648
  %v1047 = vmul.f32 %v1046, 1.442695
  %v1048 = vpow.pop %v1047
  %v1049 = vadd.f32 %v1048, 1.0
  %v1050 = vrcp.pop %v1049
  %v1051 = vmul.f32 1.0, %v1050
  %v1052 = vadd.f32 %v1030, %v606
  %v1053 = vmul.f32 %v1044, %v1052
  %v1054 = vadd.f32 %v1037, %v1053
  %v1055 = vtanh.pop %v1054
  %v1056 = vsub.f32 1.0, %v1051
  %v1057 = vmul.f32 %v1056, %v1055
  %v1058 = vmul.f32 %v1051, %v951
  %v1059 = vadd.f32 %v1057, %v1058
  %1060 = vst [vmem:[#allocation3 + $0x10] sm:$0xff] %v1059
  %v1061 = vpack.c.bf16 %v1059, %v1059
  %1062 = vmatprep.subr.bf16.mxu0 %v691
  %1063 = vmatpush1.bf16.msra.mxu0 %v690
  %1064 = vmatprep.subr.bf16.mxu0 %v694
  %1065 = vmatpush1.bf16.msra.mxu0 %v693
  %1066 = vmatprep.subr.bf16.mxu0 %v697
  %1067 = vmatpush1.bf16.msra.mxu0 %v696
  %1068 = vmatprep.subr.bf16.mxu0 %v700
  %1069 = vmatpush1.bf16.msra.mxu0 %v699
  %1070 = vmatprep.subr.bf16.mxu0 %v703
  %1071 = vmatpush1.bf16.msra.mxu0 %v702
  %1072 = vmatprep.subr.bf16.mxu0 %v706
  %1073 = vmatpush1.bf16.msra.mxu0 %v705
  %1074 = vmatprep.subr.bf16.mxu0 %v709
  %1075 = vmatpush1.bf16.msra.mxu0 %v708
  %1076 = vmatprep.subr.bf16.mxu0 %v712
  %1077 = vmatpush1.bf16.msra.mxu0 %v711
  %1078 = vmatprep.subr.bf16.mxu0 0
  %1079 = vmatpush1.bf16.msra.mxu0 0
  %1080 = vmatprep.subr.bf16.mxu0 0
  %1081 = vmatpush1.bf16.msra.mxu0 0
  %1082 = vmatprep.subr.bf16.mxu0 0
  %1083 = vmatpush1.bf16.msra.mxu0 0
  %1084 = vmatprep.subr.bf16.mxu0 0
  %1085 = vmatpush1.bf16.msra.mxu0 0
  %1086 = vmatprep.subr.bf16.mxu0 0
  %1087 = vmatpush1.bf16.msra.mxu0 0
  %1088 = vmatprep.subr.bf16.mxu0 0
  %1089 = vmatpush1.bf16.msra.mxu0 0
  %1090 = vmatprep.subr.bf16.mxu0 0
  %1091 = vmatpush1.bf16.msra.mxu0 0
  %1092 = vmatprep.subr.bf16.mxu0 0
  %1093 = vmatpush1.bf16.msra.mxu0 0
  %1094 = vmatprep.mubr.bf16.mxu0 0
  %1095 = vmatmul.mubr.bf16.gmra.mrb[0].mxu0 %v1061
  %v1096 = vpop.f32.mrb[0].mxu0
  %v1097 = vadd.f32 0.0, %v1096
  %v1098 = vpop.f32.mrb[0].mxu0
  %v1099 = vadd.f32 0.0, %v1098
  %v1100 = vpop.f32.mrb[0].mxu0
  %v1101 = vpop.f32.mrb[0].mxu0
  %1102 = vdwg.mxu0
  %1103 = vmatprep.subr.bf16.mxu0 0
  %1104 = vmatpush1.bf16.msra.mxu0 %v692
  %1105 = vmatprep.subr.bf16.mxu0 0
  %1106 = vmatpush1.bf16.msra.mxu0 %v695
  %1107 = vmatprep.subr.bf16.mxu0 0
  %1108 = vmatpush1.bf16.msra.mxu0 %v698
  %1109 = vmatprep.subr.bf16.mxu0 0
  %1110 = vmatpush1.bf16.msra.mxu0 %v701
  %1111 = vmatprep.subr.bf16.mxu0 0
  %1112 = vmatpush1.bf16.msra.mxu0 %v704
  %1113 = vmatprep.subr.bf16.mxu0 0
  %1114 = vmatpush1.bf16.msra.mxu0 %v707
  %1115 = vmatprep.subr.bf16.mxu0 0
  %1116 = vmatpush1.bf16.msra.mxu0 %v710
  %1117 = vmatprep.subr.bf16.mxu0 0
  %1118 = vmatpush1.bf16.msra.mxu0 %v713
  %1119 = vmatprep.subr.bf16.mxu0 0
  %1120 = vmatpush1.bf16.msra.mxu0 0
  %1121 = vmatprep.subr.bf16.mxu0 0
  %1122 = vmatpush1.bf16.msra.mxu0 0
  %1123 = vmatprep.subr.bf16.mxu0 0
  %1124 = vmatpush1.bf16.msra.mxu0 0
  %1125 = vmatprep.subr.bf16.mxu0 0
  %1126 = vmatpush1.bf16.msra.mxu0 0
  %1127 = vmatprep.subr.bf16.mxu0 0
  %1128 = vmatpush1.bf16.msra.mxu0 0
  %1129 = vmatprep.subr.bf16.mxu0 0
  %1130 = vmatpush1.bf16.msra.mxu0 0
  %1131 = vmatprep.subr.bf16.mxu0 0
  %1132 = vmatpush1.bf16.msra.mxu0 0
  %1133 = vmatprep.subr.bf16.mxu0 0
  %1134 = vmatpush1.bf16.msra.mxu0 0
  %1135 = vmatprep.mubr.bf16.mxu0 0
  %1136 = vmatmul.mubr.bf16.gmra.mrb[0].mxu0 %v1061
  %v1137 = vpop.f32.mrb[0].mxu0
  %v1138 = vadd.f32 0.0, %v1137
  %v1139 = vpop.f32.mrb[0].mxu0
  %v1140 = vpop.f32.mrb[0].mxu0
  %v1141 = vpop.f32.mrb[0].mxu0
  %1142 = vdwg.mxu0
  %v1143 = vld [vmem:[#allocation2 + $0x48] sm:$0xff]
  %v1144 = vld [vmem:[#allocation2 + $0x50] sm:$0xff]
  %v1145 = vld [vmem:[#allocation2 + $0x58] sm:$0xff]
  %v1146 = vadd.f32 %v1143, %v1097
  %v1147 = vxor.u32 %v1146, 2147483648
  %v1148 = vmul.f32 %v1147, 1.442695
  %v1149 = vpow.pop %v1148
  %v1150 = vadd.f32 %v1149, 1.0
  %v1151 = vrcp.pop %v1150
  %v1152 = vmul.f32 1.0, %v1151
  %v1153 = vadd.f32 %v1144, %v1099
  %v1154 = vxor.u32 %v1153, 2147483648
  %v1155 = vmul.f32 %v1154, 1.442695
  %v1156 = vpow.pop %v1155
  %v1157 = vadd.f32 %v1156, 1.0
  %v1158 = vrcp.pop %v1157
  %v1159 = vmul.f32 1.0, %v1158
  %v1160 = vadd.f32 %v1138, %v606
  %v1161 = vmul.f32 %v1152, %v1160
  %v1162 = vadd.f32 %v1145, %v1161
  %v1163 = vtanh.pop %v1162
  %v1164 = vsub.f32 1.0, %v1159
  %v1165 = vmul.f32 %v1164, %v1163
  %v1166 = vmul.f32 %v1159, %v1059
  %v1167 = vadd.f32 %v1165, %v1166
  %1168 = vst [vmem:[#allocation3 + $0x18] sm:$0xff] %v1167
  %v1169 = vpack.c.bf16 %v1167, %v1167
  %1170 = vmatprep.subr.bf16.mxu0 %v691
  %1171 = vmatpush1.bf16.msra.mxu0 %v690
  %1172 = vmatprep.subr.bf16.mxu0 %v694
  %1173 = vmatpush1.bf16.msra.mxu0 %v693
  %1174 = vmatprep.subr.bf16.mxu0 %v697
  %1175 = vmatpush1.bf16.msra.mxu0 %v696
  %1176 = vmatprep.subr.bf16.mxu0 %v700
  %1177 = vmatpush1.bf16.msra.mxu0 %v699
  %1178 = vmatprep.subr.bf16.mxu0 %v703
  %1179 = vmatpush1.bf16.msra.mxu0 %v702
  %1180 = vmatprep.subr.bf16.mxu0 %v706
  %1181 = vmatpush1.bf16.msra.mxu0 %v705
  %1182 = vmatprep.subr.bf16.mxu0 %v709
  %1183 = vmatpush1.bf16.msra.mxu0 %v708
  %1184 = vmatprep.subr.bf16.mxu0 %v712
  %1185 = vmatpush1.bf16.msra.mxu0 %v711
  %1186 = vmatprep.subr.bf16.mxu0 0
  %1187 = vmatpush1.bf16.msra.mxu0 0
  %1188 = vmatprep.subr.bf16.mxu0 0
  %1189 = vmatpush1.bf16.msra.mxu0 0
  %1190 = vmatprep.subr.bf16.mxu0 0
  %1191 = vmatpush1.bf16.msra.mxu0 0
  %1192 = vmatprep.subr.bf16.mxu0 0
  %1193 = vmatpush1.bf16.msra.mxu0 0
  %1194 = vmatprep.subr.bf16.mxu0 0
  %1195 = vmatpush1.bf16.msra.mxu0 0
  %1196 = vmatprep.subr.bf16.mxu0 0
  %1197 = vmatpush1.bf16.msra.mxu0 0
  %1198 = vmatprep.subr.bf16.mxu0 0
  %1199 = vmatpush1.bf16.msra.mxu0 0
  %1200 = vmatprep.subr.bf16.mxu0 0
  %1201 = vmatpush1.bf16.msra.mxu0 0
  %1202 = vmatprep.mubr.bf16.mxu0 0
  %1203 = vmatmul.mubr.bf16.gmra.mrb[0].mxu0 %v1169
  %v1204 = vpop.f32.mrb[0].mxu0
  %v1205 = vadd.f32 0.0, %v1204
  %v1206 = vpop.f32.mrb[0].mxu0
  %v1207 = vadd.f32 0.0, %v1206
  %v1208 = vpop.f32.mrb[0].mxu0
  %v1209 = vpop.f32.mrb[0].mxu0
  %1210 = vdwg.mxu0
  %1211 = vmatprep.subr.bf16.mxu0 0
  %1212 = vmatpush1.bf16.msra.mxu0 %v692
  %1213 = vmatprep.subr.bf16.mxu0 0
  %1214 = vmatpush1.bf16.msra.mxu0 %v695
  %1215 = vmatprep.subr.bf16.mxu0 0
  %1216 = vmatpush1.bf16.msra.mxu0 %v698
  %1217 = vmatprep.subr.bf16.mxu0 0
  %1218 = vmatpush1.bf16.msra.mxu0 %v701
  %1219 = vmatprep.subr.bf16.mxu0 0
  %1220 = vmatpush1.bf16.msra.mxu0 %v704
  %1221 = vmatprep.subr.bf16.mxu0 0
  %1222 = vmatpush1.bf16.msra.mxu0 %v707
  %1223 = vmatprep.subr.bf16.mxu0 0
  %1224 = vmatpush1.bf16.msra.mxu0 %v710
  %1225 = vmatprep.subr.bf16.mxu0 0
  %1226 = vmatpush1.bf16.msra.mxu0 %v713
  %1227 = vmatprep.subr.bf16.mxu0 0
  %1228 = vmatpush1.bf16.msra.mxu0 0
  %1229 = vmatprep.subr.bf16.mxu0 0
  %1230 = vmatpush1.bf16.msra.mxu0 0
  %1231 = vmatprep.subr.bf16.mxu0 0
  %1232 = vmatpush1.bf16.msra.mxu0 0
  %1233 = vmatprep.subr.bf16.mxu0 0
  %1234 = vmatpush1.bf16.msra.mxu0 0
  %1235 = vmatprep.subr.bf16.mxu0 0
  %1236 = vmatpush1.bf16.msra.mxu0 0
  %1237 = vmatprep.subr.bf16.mxu0 0
  %1238 = vmatpush1.bf16.msra.mxu0 0
  %1239 = vmatprep.subr.bf16.mxu0 0
  %1240 = vmatpush1.bf16.msra.mxu0 0
  %1241 = vmatprep.subr.bf16.mxu0 0
  %1242 = vmatpush1.bf16.msra.mxu0 0
  %1243 = vmatprep.mubr.bf16.mxu0 0
  %1244 = vmatmul.mubr.bf16.gmra.mrb[0].mxu0 %v1169
  %v1245 = vpop.f32.mrb[0].mxu0
  %v1246 = vadd.f32 0.0, %v1245
  %v1247 = vpop.f32.mrb[0].mxu0
  %v1248 = vpop.f32.mrb[0].mxu0
  %v1249 = vpop.f32.mrb[0].mxu0
  %1250 = vdwg.mxu0
  %v1251 = vld [vmem:[#allocation2 + $0x60] sm:$0xff]
  %v1252 = vld [vmem:[#allocation2 + $0x68] sm:$0xff]
  %v1253 = vld [vmem:[#allocation2 + $0x70] sm:$0xff]
  %v1254 = vadd.f32 %v1251, %v1205
  %v1255 = vxor.u32 %v1254, 2147483648
  %v1256 = vmul.f32 %v1255, 1.442695
  %v1257 = vpow.pop %v1256
  %v1258 = vadd.f32 %v1257, 1.0
  %v1259 = vrcp.pop %v1258
  %v1260 = vmul.f32 1.0, %v1259
  %v1261 = vadd.f32 %v1252, %v1207
  %v1262 = vxor.u32 %v1261, 2147483648
  %v1263 = vmul.f32 %v1262, 1.442695
  %v1264 = vpow.pop %v1263
  %v1265 = vadd.f32 %v1264, 1.0
  %v1266 = vrcp.pop %v1265
  %v1267 = vmul.f32 1.0, %v1266
  %v1268 = vadd.f32 %v1246, %v606
  %v1269 = vmul.f32 %v1260, %v1268
  %v1270 = vadd.f32 %v1253, %v1269
  %v1271 = vtanh.pop %v1270
  %v1272 = vsub.f32 1.0, %v1267
  %v1273 = vmul.f32 %v1272, %v1271
  %v1274 = vmul.f32 %v1267, %v1167
  %v1275 = vadd.f32 %v1273, %v1274
  %1276 = vst [vmem:[#allocation3 + $0x20] sm:$0xff] %v1275
  %v1277 = vpack.c.bf16 %v1275, %v1275
  %1278 = vmatprep.subr.bf16.mxu0 %v691
  %1279 = vmatpush1.bf16.msra.mxu0 %v690
  %1280 = vmatprep.subr.bf16.mxu0 %v694
  %1281 = vmatpush1.bf16.msra.mxu0 %v693
  %1282 = vmatprep.subr.bf16.mxu0 %v697
  %1283 = vmatpush1.bf16.msra.mxu0 %v696
  %1284 = vmatprep.subr.bf16.mxu0 %v700
  %1285 = vmatpush1.bf16.msra.mxu0 %v699
  %1286 = vmatprep.subr.bf16.mxu0 %v703
  %1287 = vmatpush1.bf16.msra.mxu0 %v702
  %1288 = vmatprep.subr.bf16.mxu0 %v706
  %1289 = vmatpush1.bf16.msra.mxu0 %v705
  %1290 = vmatprep.subr.bf16.mxu0 %v709
  %1291 = vmatpush1.bf16.msra.mxu0 %v708
  %1292 = vmatprep.subr.bf16.mxu0 %v712
  %1293 = vmatpush1.bf16.msra.mxu0 %v711
  %1294 = vmatprep.subr.bf16.mxu0 0
  %1295 = vmatpush1.bf16.msra.mxu0 0
  %1296 = vmatprep.subr.bf16.mxu0 0
  %1297 = vmatpush1.bf16.msra.mxu0 0
  %1298 = vmatprep.subr.bf16.mxu0 0
  %1299 = vmatpush1.bf16.msra.mxu0 0
  %1300 = vmatprep.subr.bf16.mxu0 0
  %1301 = vmatpush1.bf16.msra.mxu0 0
  %1302 = vmatprep.subr.bf16.mxu0 0
  %1303 = vmatpush1.bf16.msra.mxu0 0
  %1304 = vmatprep.subr.bf16.mxu0 0
  %1305 = vmatpush1.bf16.msra.mxu0 0
  %1306 = vmatprep.subr.bf16.mxu0 0
  %1307 = vmatpush1.bf16.msra.mxu0 0
  %1308 = vmatprep.subr.bf16.mxu0 0
  %1309 = vmatpush1.bf16.msra.mxu0 0
  %1310 = vmatprep.mubr.bf16.mxu0 0
  %1311 = vmatmul.mubr.bf16.gmra.mrb[0].mxu0 %v1277
  %v1312 = vpop.f32.mrb[0].mxu0
  %v1313 = vadd.f32 0.0, %v1312
  %v1314 = vpop.f32.mrb[0].mxu0
  %v1315 = vadd.f32 0.0, %v1314
  %v1316 = vpop.f32.mrb[0].mxu0
  %v1317 = vpop.f32.mrb[0].mxu0
  %1318 = vdwg.mxu0
  %1319 = vmatprep.subr.bf16.mxu0 0
  %1320 = vmatpush1.bf16.msra.mxu0 %v692
  %1321 = vmatprep.subr.bf16.mxu0 0
  %1322 = vmatpush1.bf16.msra.mxu0 %v695
  %1323 = vmatprep.subr.bf16.mxu0 0
  %1324 = vmatpush1.bf16.msra.mxu0 %v698
  %1325 = vmatprep.subr.bf16.mxu0 0
  %1326 = vmatpush1.bf16.msra.mxu0 %v701
  %1327 = vmatprep.subr.bf16.mxu0 0
  %1328 = vmatpush1.bf16.msra.mxu0 %v704
  %1329 = vmatprep.subr.bf16.mxu0 0
  %1330 = vmatpush1.bf16.msra.mxu0 %v707
  %1331 = vmatprep.subr.bf16.mxu0 0
  %1332 = vmatpush1.bf16.msra.mxu0 %v710
  %1333 = vmatprep.subr.bf16.mxu0 0
  %1334 = vmatpush1.bf16.msra.mxu0 %v713
  %1335 = vmatprep.subr.bf16.mxu0 0
  %1336 = vmatpush1.bf16.msra.mxu0 0
  %1337 = vmatprep.subr.bf16.mxu0 0
  %1338 = vmatpush1.bf16.msra.mxu0 0
  %1339 = vmatprep.subr.bf16.mxu0 0
  %1340 = vmatpush1.bf16.msra.mxu0 0
  %1341 = vmatprep.subr.bf16.mxu0 0
  %1342 = vmatpush1.bf16.msra.mxu0 0
  %1343 = vmatprep.subr.bf16.mxu0 0
  %1344 = vmatpush1.bf16.msra.mxu0 0
  %1345 = vmatprep.subr.bf16.mxu0 0
  %1346 = vmatpush1.bf16.msra.mxu0 0
  %1347 = vmatprep.subr.bf16.mxu0 0
  %1348 = vmatpush1.bf16.msra.mxu0 0
  %1349 = vmatprep.subr.bf16.mxu0 0
  %1350 = vmatpush1.bf16.msra.mxu0 0
  %1351 = vmatprep.mubr.bf16.mxu0 0
  %1352 = vmatmul.mubr.bf16.gmra.mrb[0].mxu0 %v1277
  %v1353 = vpop.f32.mrb[0].mxu0
  %v1354 = vadd.f32 0.0, %v1353
  %v1355 = vpop.f32.mrb[0].mxu0
  %v1356 = vpop.f32.mrb[0].mxu0
  %v1357 = vpop.f32.mrb[0].mxu0
  %1358 = vdwg.mxu0
  %v1359 = vld [vmem:[#allocation2 + $0x78] sm:$0xff]
  %v1360 = vld [vmem:[#allocation2 + $0x80] sm:$0xff]
  %v1361 = vld [vmem:[#allocation2 + $0x88] sm:$0xff]
  %v1362 = vadd.f32 %v1359, %v1313
  %v1363 = vxor.u32 %v1362, 2147483648
  %v1364 = vmul.f32 %v1363, 1.442695
  %v1365 = vpow.pop %v1364
  %v1366 = vadd.f32 %v1365, 1.0
  %v1367 = vrcp.pop %v1366
  %v1368 = vmul.f32 1.0, %v1367
  %v1369 = vadd.f32 %v1360, %v1315
  %v1370 = vxor.u32 %v1369, 2147483648
  %v1371 = vmul.f32 %v1370, 1.442695
  %v1372 = vpow.pop %v1371
  %v1373 = vadd.f32 %v1372, 1.0
  %v1374 = vrcp.pop %v1373
  %v1375 = vmul.f32 1.0, %v1374
  %v1376 = vadd.f32 %v1354, %v606
  %v1377 = vmul.f32 %v1368, %v1376
  %v1378 = vadd.f32 %v1361, %v1377
  %v1379 = vtanh.pop %v1378
  %v1380 = vsub.f32 1.0, %v1375
  %v1381 = vmul.f32 %v1380, %v1379
  %v1382 = vmul.f32 %v1375, %v1275
  %v1383 = vadd.f32 %v1381, %v1382
  %1384 = vst [vmem:[#allocation3 + $0x28] sm:$0xff] %v1383
  %v1385 = vpack.c.bf16 %v1383, %v1383
  %1386 = vmatprep.subr.bf16.mxu0 %v691
  %1387 = vmatpush1.bf16.msra.mxu0 %v690
  %1388 = vmatprep.subr.bf16.mxu0 %v694
  %1389 = vmatpush1.bf16.msra.mxu0 %v693
  %1390 = vmatprep.subr.bf16.mxu0 %v697
  %1391 = vmatpush1.bf16.msra.mxu0 %v696
  %1392 = vmatprep.subr.bf16.mxu0 %v700
  %1393 = vmatpush1.bf16.msra.mxu0 %v699
  %1394 = vmatprep.subr.bf16.mxu0 %v703
  %1395 = vmatpush1.bf16.msra.mxu0 %v702
  %1396 = vmatprep.subr.bf16.mxu0 %v706
  %1397 = vmatpush1.bf16.msra.mxu0 %v705
  %1398 = vmatprep.subr.bf16.mxu0 %v709
  %1399 = vmatpush1.bf16.msra.mxu0 %v708
  %1400 = vmatprep.subr.bf16.mxu0 %v712
  %1401 = vmatpush1.bf16.msra.mxu0 %v711
  %1402 = vmatprep.subr.bf16.mxu0 0
  %1403 = vmatpush1.bf16.msra.mxu0 0
  %1404 = vmatprep.subr.bf16.mxu0 0
  %1405 = vmatpush1.bf16.msra.mxu0 0
  %1406 = vmatprep.subr.bf16.mxu0 0
  %1407 = vmatpush1.bf16.msra.mxu0 0
  %1408 = vmatprep.subr.bf16.mxu0 0
  %1409 = vmatpush1.bf16.msra.mxu0 0
  %1410 = vmatprep.subr.bf16.mxu0 0
  %1411 = vmatpush1.bf16.msra.mxu0 0
  %1412 = vmatprep.subr.bf16.mxu0 0
  %1413 = vmatpush1.bf16.msra.mxu0 0
  %1414 = vmatprep.subr.bf16.mxu0 0
  %1415 = vmatpush1.bf16.msra.mxu0 0
  %1416 = vmatprep.subr.bf16.mxu0 0
  %1417 = vmatpush1.bf16.msra.mxu0 0
  %1418 = vmatprep.mubr.bf16.mxu0 0
  %1419 = vmatmul.mubr.bf16.gmra.mrb[0].mxu0 %v1385
  %v1420 = vpop.f32.mrb[0].mxu0
  %v1421 = vadd.f32 0.0, %v1420
  %v1422 = vpop.f32.mrb[0].mxu0
  %v1423 = vadd.f32 0.0, %v1422
  %v1424 = vpop.f32.mrb[0].mxu0
  %v1425 = vpop.f32.mrb[0].mxu0
  %1426 = vdwg.mxu0
  %1427 = vmatprep.subr.bf16.mxu0 0
  %1428 = vmatpush1.bf16.msra.mxu0 %v692
  %1429 = vmatprep.subr.bf16.mxu0 0
  %1430 = vmatpush1.bf16.msra.mxu0 %v695
  %1431 = vmatprep.subr.bf16.mxu0 0
  %1432 = vmatpush1.bf16.msra.mxu0 %v698
  %1433 = vmatprep.subr.bf16.mxu0 0
  %1434 = vmatpush1.bf16.msra.mxu0 %v701
  %1435 = vmatprep.subr.bf16.mxu0 0
  %1436 = vmatpush1.bf16.msra.mxu0 %v704
  %1437 = vmatprep.subr.bf16.mxu0 0
  %1438 = vmatpush1.bf16.msra.mxu0 %v707
  %1439 = vmatprep.subr.bf16.mxu0 0
  %1440 = vmatpush1.bf16.msra.mxu0 %v710
  %1441 = vmatprep.subr.bf16.mxu0 0
  %1442 = vmatpush1.bf16.msra.mxu0 %v713
  %1443 = vmatprep.subr.bf16.mxu0 0
  %1444 = vmatpush1.bf16.msra.mxu0 0
  %1445 = vmatprep.subr.bf16.mxu0 0
  %1446 = vmatpush1.bf16.msra.mxu0 0
  %1447 = vmatprep.subr.bf16.mxu0 0
  %1448 = vmatpush1.bf16.msra.mxu0 0
  %1449 = vmatprep.subr.bf16.mxu0 0
  %1450 = vmatpush1.bf16.msra.mxu0 0
  %1451 = vmatprep.subr.bf16.mxu0 0
  %1452 = vmatpush1.bf16.msra.mxu0 0
  %1453 = vmatprep.subr.bf16.mxu0 0
  %1454 = vmatpush1.bf16.msra.mxu0 0
  %1455 = vmatprep.subr.bf16.mxu0 0
  %1456 = vmatpush1.bf16.msra.mxu0 0
  %1457 = vmatprep.subr.bf16.mxu0 0
  %1458 = vmatpush1.bf16.msra.mxu0 0
  %1459 = vmatprep.mubr.bf16.mxu0 0
  %1460 = vmatmul.mubr.bf16.gmra.mrb[0].mxu0 %v1385
  %v1461 = vpop.f32.mrb[0].mxu0
  %v1462 = vadd.f32 0.0, %v1461
  %v1463 = vpop.f32.mrb[0].mxu0
  %v1464 = vpop.f32.mrb[0].mxu0
  %v1465 = vpop.f32.mrb[0].mxu0
  %1466 = vdwg.mxu0
  %v1467 = vld [vmem:[#allocation2 + $0x90] sm:$0xff]
  %v1468 = vld [vmem:[#allocation2 + $0x98] sm:$0xff]
  %v1469 = vld [vmem:[#allocation2 + $0xa0] sm:$0xff]
  %v1470 = vadd.f32 %v1467, %v1421
  %v1471 = vxor.u32 %v1470, 2147483648
  %v1472 = vmul.f32 %v1471, 1.442695
  %v1473 = vpow.pop %v1472
  %v1474 = vadd.f32 %v1473, 1.0
  %v1475 = vrcp.pop %v1474
  %v1476 = vmul.f32 1.0, %v1475
  %v1477 = vadd.f32 %v1468, %v1423
  %v1478 = vxor.u32 %v1477, 2147483648
  %v1479 = vmul.f32 %v1478, 1.442695
  %v1480 = vpow.pop %v1479
  %v1481 = vadd.f32 %v1480, 1.0
  %v1482 = vrcp.pop %v1481
  %v1483 = vmul.f32 1.0, %v1482
  %v1484 = vadd.f32 %v1462, %v606
  %v1485 = vmul.f32 %v1476, %v1484
  %v1486 = vadd.f32 %v1469, %v1485
  %v1487 = vtanh.pop %v1486
  %v1488 = vsub.f32 1.0, %v1483
  %v1489 = vmul.f32 %v1488, %v1487
  %v1490 = vmul.f32 %v1483, %v1383
  %v1491 = vadd.f32 %v1489, %v1490
  %1492 = vst [vmem:[#allocation3 + $0x30] sm:$0xff] %v1491
  %v1493 = vpack.c.bf16 %v1491, %v1491
  %1494 = vmatprep.subr.bf16.mxu0 %v691
  %1495 = vmatpush1.bf16.msra.mxu0 %v690
  %1496 = vmatprep.subr.bf16.mxu0 %v694
  %1497 = vmatpush1.bf16.msra.mxu0 %v693
  %1498 = vmatprep.subr.bf16.mxu0 %v697
  %1499 = vmatpush1.bf16.msra.mxu0 %v696
  %1500 = vmatprep.subr.bf16.mxu0 %v700
  %1501 = vmatpush1.bf16.msra.mxu0 %v699
  %1502 = vmatprep.subr.bf16.mxu0 %v703
  %1503 = vmatpush1.bf16.msra.mxu0 %v702
  %1504 = vmatprep.subr.bf16.mxu0 %v706
  %1505 = vmatpush1.bf16.msra.mxu0 %v705
  %1506 = vmatprep.subr.bf16.mxu0 %v709
  %1507 = vmatpush1.bf16.msra.mxu0 %v708
  %1508 = vmatprep.subr.bf16.mxu0 %v712
  %1509 = vmatpush1.bf16.msra.mxu0 %v711
  %1510 = vmatprep.subr.bf16.mxu0 0
  %1511 = vmatpush1.bf16.msra.mxu0 0
  %1512 = vmatprep.subr.bf16.mxu0 0
  %1513 = vmatpush1.bf16.msra.mxu0 0
  %1514 = vmatprep.subr.bf16.mxu0 0
  %1515 = vmatpush1.bf16.msra.mxu0 0
  %1516 = vmatprep.subr.bf16.mxu0 0
  %1517 = vmatpush1.bf16.msra.mxu0 0
  %1518 = vmatprep.subr.bf16.mxu0 0
  %1519 = vmatpush1.bf16.msra.mxu0 0
  %1520 = vmatprep.subr.bf16.mxu0 0
  %1521 = vmatpush1.bf16.msra.mxu0 0
  %1522 = vmatprep.subr.bf16.mxu0 0
  %1523 = vmatpush1.bf16.msra.mxu0 0
  %1524 = vmatprep.subr.bf16.mxu0 0
  %1525 = vmatpush1.bf16.msra.mxu0 0
  %1526 = vmatprep.mubr.bf16.mxu0 0
  %1527 = vmatmul.mubr.bf16.gmra.mrb[0].mxu0 %v1493
  %v1528 = vpop.f32.mrb[0].mxu0
  %v1529 = vadd.f32 0.0, %v1528
  %v1530 = vpop.f32.mrb[0].mxu0
  %v1531 = vadd.f32 0.0, %v1530
  %v1532 = vpop.f32.mrb[0].mxu0
  %v1533 = vpop.f32.mrb[0].mxu0
  %1534 = vdwg.mxu0
  %1535 = vmatprep.subr.bf16.mxu0 0
  %1536 = vmatpush1.bf16.msra.mxu0 %v692
  %1537 = vmatprep.subr.bf16.mxu0 0
  %1538 = vmatpush1.bf16.msra.mxu0 %v695
  %1539 = vmatprep.subr.bf16.mxu0 0
  %1540 = vmatpush1.bf16.msra.mxu0 %v698
  %1541 = vmatprep.subr.bf16.mxu0 0
  %1542 = vmatpush1.bf16.msra.mxu0 %v701
  %1543 = vmatprep.subr.bf16.mxu0 0
  %1544 = vmatpush1.bf16.msra.mxu0 %v704
  %1545 = vmatprep.subr.bf16.mxu0 0
  %1546 = vmatpush1.bf16.msra.mxu0 %v707
  %1547 = vmatprep.subr.bf16.mxu0 0
  %1548 = vmatpush1.bf16.msra.mxu0 %v710
  %1549 = vmatprep.subr.bf16.mxu0 0
  %1550 = vmatpush1.bf16.msra.mxu0 %v713
  %1551 = vmatprep.subr.bf16.mxu0 0
  %1552 = vmatpush1.bf16.msra.mxu0 0
  %1553 = vmatprep.subr.bf16.mxu0 0
  %1554 = vmatpush1.bf16.msra.mxu0 0
  %1555 = vmatprep.subr.bf16.mxu0 0
  %1556 = vmatpush1.bf16.msra.mxu0 0
  %1557 = vmatprep.subr.bf16.mxu0 0
  %1558 = vmatpush1.bf16.msra.mxu0 0
  %1559 = vmatprep.subr.bf16.mxu0 0
  %1560 = vmatpush1.bf16.msra.mxu0 0
  %1561 = vmatprep.subr.bf16.mxu0 0
  %1562 = vmatpush1.bf16.msra.mxu0 0
  %1563 = vmatprep.subr.bf16.mxu0 0
  %1564 = vmatpush1.bf16.msra.mxu0 0
  %1565 = vmatprep.subr.bf16.mxu0 0
  %1566 = vmatpush1.bf16.msra.mxu0 0
  %1567 = vmatprep.mubr.bf16.mxu0 0
  %1568 = vmatmul.mubr.bf16.gmra.mrb[0].mxu0 %v1493
  %v1569 = vpop.f32.mrb[0].mxu0
  %v1570 = vadd.f32 0.0, %v1569
  %v1571 = vpop.f32.mrb[0].mxu0
  %v1572 = vpop.f32.mrb[0].mxu0
  %v1573 = vpop.f32.mrb[0].mxu0
  %1574 = vdwg.mxu0
  %v1575 = vld [vmem:[#allocation2 + $0xa8] sm:$0xff]
  %v1576 = vld [vmem:[#allocation2 + $0xb0] sm:$0xff]
  %v1577 = vld [vmem:[#allocation2 + $0xb8] sm:$0xff]
  %v1578 = vadd.f32 %v1575, %v1529
  %v1579 = vxor.u32 %v1578, 2147483648
  %v1580 = vmul.f32 %v1579, 1.442695
  %v1581 = vpow.pop %v1580
  %v1582 = vadd.f32 %v1581, 1.0
  %v1583 = vrcp.pop %v1582
  %v1584 = vmul.f32 1.0, %v1583
  %v1585 = vadd.f32 %v1576, %v1531
  %v1586 = vxor.u32 %v1585, 2147483648
  %v1587 = vmul.f32 %v1586, 1.442695
  %v1588 = vpow.pop %v1587
  %v1589 = vadd.f32 %v1588, 1.0
  %v1590 = vrcp.pop %v1589
  %v1591 = vmul.f32 1.0, %v1590
  %v1592 = vadd.f32 %v1570, %v606
  %v1593 = vmul.f32 %v1584, %v1592
  %v1594 = vadd.f32 %v1577, %v1593
  %v1595 = vtanh.pop %v1594
  %v1596 = vsub.f32 1.0, %v1591
  %v1597 = vmul.f32 %v1596, %v1595
  %v1598 = vmul.f32 %v1591, %v1491
  %v1599 = vadd.f32 %v1597, %v1598
  %1600 = vst [vmem:[#allocation3 + $0x38] sm:$0xff] %v1599
  %1601 = vst [vmem:[%s10] sm:$0xff] %v1599
  %v1602 = vld [vmem:[#allocation3] sm:$0xff]
  %v1603 = vld [vmem:[#allocation3 + $0x8] sm:$0xff]
  %v1604 = vld [vmem:[#allocation3 + $0x10] sm:$0xff]
  %v1605 = vld [vmem:[#allocation3 + $0x18] sm:$0xff]
  %v1606 = vld [vmem:[#allocation3 + $0x20] sm:$0xff]
  %v1607 = vld [vmem:[#allocation3 + $0x28] sm:$0xff]
  %v1608 = vld [vmem:[#allocation3 + $0x30] sm:$0xff]
  %v1609 = vld [vmem:[#allocation3 + $0x38] sm:$0xff]
  %v1610 = vpack.c.bf16 %v1603, %v1602
  %v1611 = vpack.c.bf16 %v1605, %v1604
  %v1612 = vpack.c.bf16 %v1607, %v1606
  %v1613 = vpack.c.bf16 %v1609, %v1608
  %v1614 = vld [vmem:[%s7] sm:$0xf]
  %v1615 = vld [vmem:[%s7 + $0x4] sm:$0xf]
  %v1616 = vld [vmem:[%s7 + $0x8] sm:$0xf]
  %v1617 = vld [vmem:[%s7 + $0xc] sm:$0xf]
  %v1618 = vld [vmem:[%s7 + $0x10] sm:$0xf]
  %v1619 = vld [vmem:[%s7 + $0x14] sm:$0xf]
  %v1620 = vld [vmem:[%s7 + $0x18] sm:$0xf]
  %v1621 = vld [vmem:[%s7 + $0x1c] sm:$0xf]
  %v1622 = vld [vmem:[%s7 + $0x20] sm:$0xf]
  %v1623 = vld [vmem:[%s7 + $0x24] sm:$0xf]
  %v1624 = vld [vmem:[%s7 + $0x28] sm:$0xf]
  %v1625 = vld [vmem:[%s7 + $0x2c] sm:$0xf]
  %v1626 = vld [vmem:[%s7 + $0x30] sm:$0xf]
  %v1627 = vld [vmem:[%s7 + $0x34] sm:$0xf]
  %v1628 = vld [vmem:[%s7 + $0x38] sm:$0xf]
  %v1629 = vld [vmem:[%s7 + $0x3c] sm:$0xf]
  %v1630 = vld [vmem:[%s8] sm:$0x1]
  %v1632 = vlaneseq
  %v1633 = vshrl.u32 %v1632, 7
  %v1634 = vsub.s32 0, %v1633
  %v1635 = vrot.slane %v1630, %v1634
  %v1653 = vunpack.c.l.b16 %v1614
  %v1654 = vunpack.c.l.b16 %v1615
  %v1655 = vunpack.c.l.b16 %v1616
  %v1656 = vunpack.c.l.b16 %v1617
  %v1657 = vunpack.c.l.b16 %v1618
  %v1658 = vunpack.c.l.b16 %v1619
  %v1659 = vunpack.c.l.b16 %v1620
  %v1660 = vunpack.c.l.b16 %v1621
  %v1661 = vunpack.c.l.b16 %v1622
  %v1662 = vunpack.c.l.b16 %v1623
  %v1663 = vunpack.c.l.b16 %v1624
  %v1664 = vunpack.c.l.b16 %v1625
  %v1665 = vunpack.c.l.b16 %v1626
  %v1666 = vunpack.c.l.b16 %v1627
  %v1667 = vunpack.c.l.b16 %v1628
  %v1668 = vunpack.c.l.b16 %v1629
  %v1669 = vpack.c.b16 %v1654, %v1653
  %v1670 = vpack.c.b16 %v1656, %v1655
  %v1671 = vpack.c.b16 %v1658, %v1657
  %v1672 = vpack.c.b16 %v1660, %v1659
  %v1673 = vpack.c.b16 %v1662, %v1661
  %v1674 = vpack.c.b16 %v1664, %v1663
  %v1675 = vpack.c.b16 %v1666, %v1665
  %v1676 = vpack.c.b16 %v1668, %v1667
  %1685 = vmatprep.subr.bf16.mxu0 0
  %1686 = vmatpush1.bf16.msra.mxu0 %v1669
  %1687 = vmatprep.subr.bf16.mxu0 0
  %1688 = vmatpush1.bf16.msra.mxu0 %v1670
  %1689 = vmatprep.subr.bf16.mxu0 0
  %1690 = vmatpush1.bf16.msra.mxu0 %v1671
  %1691 = vmatprep.subr.bf16.mxu0 0
  %1692 = vmatpush1.bf16.msra.mxu0 %v1672
  %1693 = vmatprep.subr.bf16.mxu0 0
  %1694 = vmatpush1.bf16.msra.mxu0 %v1673
  %1695 = vmatprep.subr.bf16.mxu0 0
  %1696 = vmatpush1.bf16.msra.mxu0 %v1674
  %1697 = vmatprep.subr.bf16.mxu0 0
  %1698 = vmatpush1.bf16.msra.mxu0 %v1675
  %1699 = vmatprep.subr.bf16.mxu0 0
  %1700 = vmatpush1.bf16.msra.mxu0 %v1676
  %1701 = vmatprep.subr.bf16.mxu0 0
  %1702 = vmatpush1.bf16.msra.mxu0 0
  %1703 = vmatprep.subr.bf16.mxu0 0
  %1704 = vmatpush1.bf16.msra.mxu0 0
  %1705 = vmatprep.subr.bf16.mxu0 0
  %1706 = vmatpush1.bf16.msra.mxu0 0
  %1707 = vmatprep.subr.bf16.mxu0 0
  %1708 = vmatpush1.bf16.msra.mxu0 0
  %1709 = vmatprep.subr.bf16.mxu0 0
  %1710 = vmatpush1.bf16.msra.mxu0 0
  %1711 = vmatprep.subr.bf16.mxu0 0
  %1712 = vmatpush1.bf16.msra.mxu0 0
  %1713 = vmatprep.subr.bf16.mxu0 0
  %1714 = vmatpush1.bf16.msra.mxu0 0
  %1715 = vmatprep.subr.bf16.mxu0 0
  %1716 = vmatpush1.bf16.msra.mxu0 0
  %1717 = vmatprep.mubr.bf16.mxu0 0
  %1718 = vmatmul.mubr.bf16.gmra.mrb[0].mxu0 %v1610
  %v1719 = vpop.f32.mrb[0].mxu0
  %v1720 = vadd.f32 %v1635, %v1719
  %v1721 = vpop.f32.mrb[0].mxu0
  %v1722 = vpop.f32.mrb[0].mxu0
  %v1723 = vadd.f32 %v1635, %v1722
  %v1724 = vpop.f32.mrb[0].mxu0
  %1725 = vmatprep.mubr.bf16.mxu0 0
  %1726 = vmatmul.mubr.bf16.gmra.mrb[0].mxu0 %v1611
  %v1727 = vpop.f32.mrb[0].mxu0
  %v1728 = vadd.f32 %v1635, %v1727
  %v1729 = vpop.f32.mrb[0].mxu0
  %v1730 = vpop.f32.mrb[0].mxu0
  %v1731 = vadd.f32 %v1635, %v1730
  %v1732 = vpop.f32.mrb[0].mxu0
  %1733 = vmatprep.mubr.bf16.mxu0 0
  %1734 = vmatmul.mubr.bf16.gmra.mrb[0].mxu0 %v1612
  %v1735 = vpop.f32.mrb[0].mxu0
  %v1736 = vadd.f32 %v1635, %v1735
  %v1737 = vpop.f32.mrb[0].mxu0
  %v1738 = vpop.f32.mrb[0].mxu0
  %v1739 = vadd.f32 %v1635, %v1738
  %v1740 = vpop.f32.mrb[0].mxu0
  %1741 = vmatprep.mubr.bf16.mxu0 0
  %1742 = vmatmul.mubr.bf16.gmra.mrb[0].mxu0 %v1613
  %v1743 = vpop.f32.mrb[0].mxu0
  %v1744 = vadd.f32 %v1635, %v1743
  %v1745 = vpop.f32.mrb[0].mxu0
  %v1746 = vpop.f32.mrb[0].mxu0
  %v1747 = vadd.f32 %v1635, %v1746
  %v1748 = vpop.f32.mrb[0].mxu0
  %1749 = vdwg.mxu0
  %1750 = vmax.xlane.f32.xlu0 %v1720
  %v1751 = vpop.xlane.xlu0 %1750
  %1752 = vmax.xlane.f32.xlu0 %v1723
  %v1753 = vpop.xlane.xlu0 %1752
  %1754 = vmax.xlane.f32.xlu0 %v1728
  %v1755 = vpop.xlane.xlu0 %1754
  %1756 = vmax.xlane.f32.xlu0 %v1731
  %v1757 = vpop.xlane.xlu0 %1756
  %1758 = vmax.xlane.f32.xlu0 %v1736
  %v1759 = vpop.xlane.xlu0 %1758
  %1760 = vmax.xlane.f32.xlu0 %v1739
  %v1761 = vpop.xlane.xlu0 %1760
  %1762 = vmax.xlane.f32.xlu0 %v1744
  %v1763 = vpop.xlane.xlu0 %1762
  %1764 = vmax.xlane.f32.xlu0 %v1747
  %v1765 = vpop.xlane.xlu0 %1764
  %v1766 = vsub.f32 %v1720, %v1751
  %v1767 = vsub.f32 %v1723, %v1753
  %v1768 = vsub.f32 %v1728, %v1755
  %v1769 = vsub.f32 %v1731, %v1757
  %v1770 = vsub.f32 %v1736, %v1759
  %v1771 = vsub.f32 %v1739, %v1761
  %v1772 = vsub.f32 %v1744, %v1763
  %v1773 = vsub.f32 %v1747, %v1765
  %v1774 = vmul.f32 %v1766, 1.442695
  %v1775 = vpow.pop %v1774
  %v1776 = vmul.f32 %v1767, 1.442695
  %v1777 = vpow.pop %v1776
  %v1778 = vmul.f32 %v1768, 1.442695
  %v1779 = vpow.pop %v1778
  %v1780 = vmul.f32 %v1769, 1.442695
  %v1781 = vpow.pop %v1780
  %v1782 = vmul.f32 %v1770, 1.442695
  %v1783 = vpow.pop %v1782
  %v1784 = vmul.f32 %v1771, 1.442695
  %v1785 = vpow.pop %v1784
  %v1786 = vmul.f32 %v1772, 1.442695
  %v1787 = vpow.pop %v1786
  %v1788 = vmul.f32 %v1773, 1.442695
  %v1789 = vpow.pop %v1788
  %1790 = vadd.xlane.f32.xlu0 %v1775
  %v1791 = vpop.xlane.xlu0 %1790
  %1792 = vadd.xlane.f32.xlu0 %v1777
  %v1793 = vpop.xlane.xlu0 %1792
  %1794 = vadd.xlane.f32.xlu0 %v1779
  %v1795 = vpop.xlane.xlu0 %1794
  %1796 = vadd.xlane.f32.xlu0 %v1781
  %v1797 = vpop.xlane.xlu0 %1796
  %1798 = vadd.xlane.f32.xlu0 %v1783
  %v1799 = vpop.xlane.xlu0 %1798
  %1800 = vadd.xlane.f32.xlu0 %v1785
  %v1801 = vpop.xlane.xlu0 %1800
  %1802 = vadd.xlane.f32.xlu0 %v1787
  %v1803 = vpop.xlane.xlu0 %1802
  %1804 = vadd.xlane.f32.xlu0 %v1789
  %v1805 = vpop.xlane.xlu0 %1804
  %v1806 = vrcp.pop %v1791
  %v1807 = vrcp.pop %v1793
  %v1808 = vrcp.pop %v1795
  %v1809 = vrcp.pop %v1797
  %v1810 = vrcp.pop %v1799
  %v1811 = vrcp.pop %v1801
  %v1812 = vrcp.pop %v1803
  %v1813 = vrcp.pop %v1805
  %v1814 = vmul.f32 %v1775, %v1806
  %v1815 = vmul.f32 %v1777, %v1807
  %v1816 = vmul.f32 %v1779, %v1808
  %v1817 = vmul.f32 %v1781, %v1809
  %v1818 = vmul.f32 %v1783, %v1810
  %v1819 = vmul.f32 %v1785, %v1811
  %v1820 = vmul.f32 %v1787, %v1812
  %v1821 = vmul.f32 %v1789, %v1813
  %1822 = vst [vmem:[%s9] sm:$0xff] %v1814
  %1823 = vst [vmem:[%s9 + $0x8] sm:$0xff] %v1815
  %1824 = vst [vmem:[%s9 + $0x10] sm:$0xff] %v1816
  %1825 = vst [vmem:[%s9 + $0x18] sm:$0xff] %v1817
  %1826 = vst [vmem:[%s9 + $0x20] sm:$0xff] %v1818
  %1827 = vst [vmem:[%s9 + $0x28] sm:$0xff] %v1819
  %1828 = vst [vmem:[%s9 + $0x30] sm:$0xff] %v1820
  %1829 = vst [vmem:[%s9 + $0x38] sm:$0xff] %v1821
  // Predicated region
  $region38: #{attn_decoder_forward.1} parent=0 // pred_check
    _
  $region39: #{attn_decoder_forward.1} parent=0 // pred_check_branch
    %1831 = sbr.rel (0) target = $region41
  $region40: #{attn_decoder_forward.1} parent=0 // pred_region
    _
  $region41: #{attn_decoder_forward.1} parent=0 // pred_fallthru
    _
  // Predicated region
  $region42: #{attn_decoder_forward.1} parent=0 // pred_check
    _
  $region43: #{attn_decoder_forward.1} parent=0 // pred_check_branch
    %1833 = sbr.rel (0) target = $region45
  $region44: #{attn_decoder_forward.1} parent=0 // pred_region
    _
  $region45: #{attn_decoder_forward.1} parent=0 // pred_fallthru
    _
  // Predicated region
  $region46: #{attn_decoder_forward.1} parent=0 // pred_check
    _
  $region47: #{attn_decoder_forward.1} parent=0 // pred_check_branch
    %1835 = sbr.rel (0) target = $region49
  $region48: #{attn_decoder_forward.1} parent=0 // pred_region
    _
  $region49: #{attn_decoder_forward.1} parent=0 // pred_fallthru
    _
  // Predicated region
  $region50: #{attn_decoder_forward.1} parent=0 // pred_check
    _
  $region51: #{attn_decoder_forward.1} parent=0 // pred_check_branch
    %1837 = sbr.rel (0) target = $region53
  $region52: #{attn_decoder_forward.1} parent=0 // pred_region
    _
  $region53: #{attn_decoder_forward.1} parent=0 // pred_fallthru
    _

</llo_original>
